<compile_context>
chip_gen: v5e
topology: v5e:2x2
jax: 0.10.0
libtpu: 0.0.40
codegen_flags: <defaults>
</compile_context>

<pallas_src>
import functools

import jax
import jax.numpy as jnp
from jax.experimental import pallas as pl
from jax.experimental.pallas import tpu as pltpu

_NEG_INF = -1e30


# ----------------------------------------------------------------------------
# Pallas flash-attention kernel (packed-head (B, S, E) layout).
# ----------------------------------------------------------------------------
def _flash_attn_kernel(q_ref, k_ref, v_ref, o_ref, m_scr, l_scr, acc_scr, *,
                       num_heads, head_dim, block_q, block_kv, q_per_kv,
                       causal):
    H, D = num_heads, head_dim
    Tq, Tk = block_q, block_kv
    qi = pl.program_id(1)
    ki = pl.program_id(2)
    nk = pl.num_programs(2)

    @pl.when(ki == 0)
    def _init():
        m_scr[...] = jnp.full_like(m_scr, _NEG_INF)
        l_scr[...] = jnp.zeros_like(l_scr)
        acc_scr[...] = jnp.zeros_like(acc_scr)

    def _update(masked):
        # Blocks arrive already in bf16 (cast in the wrapper); q is pre-rotated
        # and pre-scaled by sm_scale.
        qb = q_ref[0]                       # (Tq, E)
        kb = k_ref[0]                       # (Tk, E)
        vb = v_ref[0]                       # (Tk, E)

        m_prev = m_scr[...]                 # (Tq, H) f32
        l_prev = l_scr[...]                 # (Tq, H) f32

        if masked:
            row = jax.lax.broadcasted_iota(jnp.int32, (Tq, Tk), 0) + qi * Tq
            col = jax.lax.broadcasted_iota(jnp.int32, (Tq, Tk), 1) + ki * Tk
            keep = row >= col               # shared by all heads

        m_cols, l_cols, alpha_cols, pv_cols = [], [], [], []
        for h in range(H):                  # static unroll (H is small here)
            sl = slice(h * D, (h + 1) * D)
            s = jax.lax.dot_general(        # (Tq, D) x (Tk, D) -> (Tq, Tk)
                qb[:, sl], kb[:, sl],
                dimension_numbers=(((1,), (1,)), ((), ())),
                preferred_element_type=jnp.float32)
            if masked:
                s = jnp.where(keep, s, _NEG_INF)

            m_prev_h = m_prev[:, h:h + 1]                         # (Tq, 1)
            m_new_h = jnp.maximum(m_prev_h,
                                  jnp.max(s, axis=-1, keepdims=True))
            alpha_h = jnp.exp(m_prev_h - m_new_h)                 # (Tq, 1)
            p = jnp.exp(s - m_new_h)                              # (Tq, Tk)
            l_new_h = alpha_h * l_prev[:, h:h + 1] + jnp.sum(
                p, axis=-1, keepdims=True)
            pv = jnp.dot(p.astype(jnp.bfloat16), vb[:, sl],
                         preferred_element_type=jnp.float32)      # (Tq, D)

            m_cols.append(m_new_h)
            l_cols.append(l_new_h)
            alpha_cols.append(jnp.broadcast_to(alpha_h, (Tq, D)))
            pv_cols.append(pv)

        # Single full-width (lane-dense) stores / accumulator RMW per KV step.
        m_scr[...] = jnp.concatenate(m_cols, axis=-1)
        l_scr[...] = jnp.concatenate(l_cols, axis=-1)
        acc_scr[...] = (jnp.concatenate(alpha_cols, axis=-1) * acc_scr[...]
                        + jnp.concatenate(pv_cols, axis=-1))

    if causal:
        band_lo = qi * q_per_kv           # first KV tile that touches the diag
        band_hi = band_lo + q_per_kv      # one past the last live KV tile

        @pl.when(ki < band_lo)            # strictly below diagonal: no mask
        def _():
            _update(masked=False)

        @pl.when(jnp.logical_and(ki >= band_lo, ki < band_hi))   # diagonal band
        def _():
            _update(masked=True)
        # ki >= band_hi: fully masked tile -> skipped (kv index_map is clamped
        # so the DMA re-uses the previous block).
    else:
        _update(masked=False)

    @pl.when(ki == nk - 1)
    def _finalize():
        inv_all = pl.reciprocal(l_scr[...], approx=True)          # (Tq, H) EUP
        inv_cols = [jnp.broadcast_to(inv_all[:, h:h + 1], (Tq, D))
                    for h in range(H)]
        o_ref[0] = (acc_scr[...] *
                    jnp.concatenate(inv_cols, axis=-1)).astype(o_ref.dtype)


def flash_attention_packed(q_r, k_r, v, *, num_heads, causal=True,
                           block_q=None, block_kv=None, out_dtype=None):
    """Flash attention on packed-head (B, S, E) tensors.

    q_r / k_r must already carry the contextual-RoPE rotation (and q_r the
    softmax scale folded in).  Inputs are cast to bf16 before entering the
    kernel; the result is returned in `out_dtype` (default bf16).
    """
    B, S, E = q_r.shape
    H = num_heads
    assert E % H == 0
    D = E // H

    # bf16 in HBM: halves q/k/v DMA traffic and per-block VMEM footprint.
    q_r = q_r.astype(jnp.bfloat16)
    k_r = k_r.astype(jnp.bfloat16)
    v = v.astype(jnp.bfloat16)
    if out_dtype is None:
        out_dtype = jnp.bfloat16

    if block_kv is None:
        block_kv = 128 if S % 128 == 0 else S
    if block_q is None:
        block_q = 256 if S % 256 == 0 else block_kv
    assert S % block_q == 0 and S % block_kv == 0
    assert block_q % block_kv == 0, "block_q must be a multiple of block_kv"
    assert block_q == S or block_q % 8 == 0
    assert block_kv == S or block_kv % 8 == 0
    r = block_q // block_kv
    n_q = S // block_q
    n_kv = S // block_kv

    kernel = functools.partial(_flash_attn_kernel, num_heads=H, head_dim=D,
                               block_q=block_q, block_kv=block_kv,
                               q_per_kv=r, causal=causal)

    def q_map(b, qi, ki):
        return (b, qi, 0)

    if causal:
        def kv_map(b, qi, ki):
            # Clamp skipped (fully masked) KV tiles to the last live one so the
            # pipeline re-uses the previous DMA instead of fetching dead data.
            return (b, jnp.minimum(ki, (qi + 1) * r - 1), 0)
    else:
        def kv_map(b, qi, ki):
            return (b, ki, 0)

    # Explicit VMEM budget (valid on v7x's 64 MiB physical VMEM as well):
    # 2 buffers x (q block + k block + v block) + 2 x out block + f32 acc + m/l.
    in_bytes = 2
    out_bytes = jnp.dtype(out_dtype).itemsize
    vmem_needed = (2 * (block_q * E + 2 * block_kv * E) * in_bytes
                   + 2 * block_q * E * out_bytes
                   + block_q * E * 4 + 2 * block_q * 128 * 4)
    vmem_limit = int(min(max(2 * vmem_needed, 32 * 1024 * 1024),
                         64 * 1024 * 1024))

    return pl.pallas_call(
        kernel,
        out_shape=jax.ShapeDtypeStruct((B, S, E), out_dtype),
        grid_spec=pltpu.PrefetchScalarGridSpec(
            num_scalar_prefetch=0,
            grid=(B, n_q, n_kv),
            in_specs=[
                pl.BlockSpec((1, block_q, E), q_map),      # q (rotated, scaled)
                pl.BlockSpec((1, block_kv, E), kv_map),    # k (rotated)
                pl.BlockSpec((1, block_kv, E), kv_map),    # v
            ],
            out_specs=pl.BlockSpec((1, block_q, E), q_map),
            scratch_shapes=[
                pltpu.VMEM((block_q, H), jnp.float32),     # running row max
                pltpu.VMEM((block_q, H), jnp.float32),     # running denom
                pltpu.VMEM((block_q, E), jnp.float32),     # output accumulator
            ],
        ),
        compiler_params=pltpu.CompilerParams(
            dimension_semantics=("parallel", "parallel", "arbitrary"),
            vmem_limit_bytes=vmem_limit),
    )(q_r, k_r, v)


# ----------------------------------------------------------------------------
# Contextual-RoPE pre-pass (O(B*S*E) elementwise + cumsum, XLA-fused).
# ----------------------------------------------------------------------------
def co_rope_rotate(q, k, *, num_heads, sm_scale, theta):
    """Gate -> cumulative contextual positions -> interleaved-pair rotation."""
    B, S, E = q.shape
    H = num_heads
    D = E // H
    assert D % 2 == 0, "head_dim must be even for the interleaved rotation"
    q4 = q.reshape(B, S, H, D)
    k4 = k.reshape(B, S, H, D)

    # TODO(synk): gate definition inside the opaque co_rope_forward Triton
    # kernel is not public; sigmoid(sm_scale * <q_i, k_i>) is assumed.
    gate = jax.nn.sigmoid(jnp.sum(q4 * k4, axis=-1) * sm_scale)      # (B,S,H)
    pos = jnp.cumsum(gate, axis=1)[..., None]                        # (B,S,H,1)

    base = 1.0 / (theta ** (jnp.arange(0, D, 2, dtype=jnp.float32) / D))
    freqs = jnp.repeat(base, 2)                                      # (D,)
    ang = pos * freqs                                                # (B,S,H,D)
    cos_a, sin_a = jnp.cos(ang), jnp.sin(ang)

    def _rot(x4):
        x2 = x4.reshape(B, S, H, D // 2, 2)
        xp = jnp.stack([-x2[..., 1], x2[..., 0]], axis=-1).reshape(B, S, H, D)
        return x4 * cos_a + xp * sin_a

    q_r = (_rot(q4) * sm_scale).reshape(B, S, E)   # fold sm_scale into q
    k_r = _rot(k4).reshape(B, S, E)
    return q_r, k_r


# ----------------------------------------------------------------------------
# Module wrapper.
# ----------------------------------------------------------------------------
class CoRoPEAttentionJAX:
    """JAX/Pallas port of the PyTorch CoRoPEAttention module (forward only)."""

    def __init__(self, embed_dim, num_heads, theta=10000.0, causal=True,
                 key=None, block_q=None, block_kv=None):
        assert embed_dim % num_heads == 0
        self.embed_dim = embed_dim
        self.num_heads = num_heads
        self.head_dim = embed_dim // num_heads
        self.theta = theta
        self.causal = causal
        self.block_q = block_q
        self.block_kv = block_kv

        if key is None:
            key = jax.random.PRNGKey(0)
        ks = jax.random.split(key, 8)
        scale = 0.02
        E = embed_dim
        # nn.Linear convention: y = x @ W.T + b, W has shape (out, in).
        self.wq = jax.random.normal(ks[0], (E, E), jnp.float32) * scale
        self.bq = jax.random.normal(ks[1], (E,), jnp.float32) * scale
        self.wk = jax.random.normal(ks[2], (E, E), jnp.float32) * scale
        self.bk = jax.random.normal(ks[3], (E,), jnp.float32) * scale
        self.wv = jax.random.normal(ks[4], (E, E), jnp.float32) * scale
        self.bv = jax.random.normal(ks[5], (E,), jnp.float32) * scale
        self.wo = jax.random.normal(ks[6], (E, E), jnp.float32) * scale
        self.bo = jax.random.normal(ks[7], (E,), jnp.float32) * scale
        # Fused QKV projection: one (3E, E) GEMM instead of three.
        self.w_qkv = jnp.concatenate([self.wq, self.wk, self.wv], axis=0)
        self.b_qkv = jnp.concatenate([self.bq, self.bk, self.bv], axis=0)

    def __call__(self, x):
        B, S, E = x.shape
        H = self.num_heads
        sm_scale = 1.0 / (self.head_dim ** 0.5)

        qkv = x @ self.w_qkv.T + self.b_qkv                 # (B, S, 3E)
        q, k, v = jnp.split(qkv, 3, axis=-1)                # (B, S, E) each

        q_r, k_r = co_rope_rotate(q, k, num_heads=H, sm_scale=sm_scale,
                                  theta=self.theta)
        attn = flash_attention_packed(q_r, k_r, v, num_heads=H,
                                      causal=self.causal,
                                      block_q=self.block_q,
                                      block_kv=self.block_kv)   # (B,S,E) bf16
        return attn @ self.wo.T + self.bo                       # f32


# ----------------------------------------------------------------------------
# Pure-JAX reference (same math, (B,H,S,D) layout) for the sanity check.
# ----------------------------------------------------------------------------
def _reference_attention(q, k, v, sm_scale, theta, causal):
    B, H, S, D = q.shape
    gate = jax.nn.sigmoid(jnp.sum(q * k, axis=-1) * sm_scale)        # (B,H,S)
    pos = jnp.cumsum(gate, axis=-1)[..., None]                       # (B,H,S,1)
    base = 1.0 / (theta ** (jnp.arange(0, D, 2, dtype=jnp.float32) / D))
    freqs = jnp.repeat(base, 2)                                      # (D,)
    ang = pos * freqs
    cos_a, sin_a = jnp.cos(ang), jnp.sin(ang)

    def rot(x):
        x2 = x.reshape(B, H, S, D // 2, 2)
        xp = jnp.stack([-x2[..., 1], x2[..., 0]], axis=-1).reshape(B, H, S, D)
        return x * cos_a + xp * sin_a

    qr, kr = rot(q), rot(k)
    s = jnp.einsum("bhqd,bhkd->bhqk", qr, kr) * sm_scale
    if causal:
        mask = jnp.tril(jnp.ones((S, S), bool))
        s = jnp.where(mask, s, -jnp.inf)
    p = jax.nn.softmax(s, axis=-1)
    return jnp.einsum("bhqk,bhkd->bhqd", p, v)


if __name__ == "__main__":
    B, S, E, H = 2, 16, 32, 4        # head_dim D = 8 (even, required for RoPE)
    D = E // H
    key = jax.random.PRNGKey(0)
    kx, kp = jax.random.split(key)
    x = jax.random.normal(kx, (B, S, E), jnp.float32)

    module = CoRoPEAttentionJAX(E, H, theta=10000.0, causal=True, key=kp)
    out = jax.block_until_ready(module(x))
    assert out.shape == (B, S, E)
    assert bool(jnp.all(jnp.isfinite(out)))

    # Pure-JAX reference.
    sm_scale = 1.0 / (D ** 0.5)
    q = x @ module.wq.T + module.bq
    k = x @ module.wk.T + module.bk
    v = x @ module.wv.T + module.bv
    qh = q.reshape(B, S, H, D).transpose(0, 2, 1, 3)
    kh = k.reshape(B, S, H, D).transpose(0, 2, 1, 3)
    vh = v.reshape(B, S, H, D).transpose(0, 2, 1, 3)
    want = _reference_attention(qh, kh, vh, sm_scale, module.theta, True)
    want = want.transpose(0, 2, 1, 3).reshape(B, S, E)

    # Sanity-check the Pallas attention core against the reference, exercising
    # (a) multi-tile online softmax + causal tile skipping (block_q=block_kv=8,
    # grid (2,2,2)) and (b) the decoupled block_q > block_kv band (16 vs 8).
    q_r, k_r = co_rope_rotate(q, k, num_heads=H, sm_scale=sm_scale,
                              theta=module.theta)
    for bq, bkv in ((8, 8), (16, 8)):
        got = jax.block_until_ready(
            flash_attention_packed(q_r, k_r, v, num_heads=H, causal=True,
                                   block_q=bq, block_kv=bkv))
        got = got.astype(jnp.float32)
        err = float(jnp.max(jnp.abs(got - want)))
        assert jnp.allclose(got, want, atol=2e-2, rtol=2e-2), (bq, bkv, err)

    # End-to-end module output vs pure-JAX forward (single-tile kernel path).
    want_out = want @ module.wo.T + module.bo
    err_out = float(jnp.max(jnp.abs(out - want_out)))
    assert jnp.allclose(out, want_out, atol=2e-2, rtol=2e-2), err_out

    print("KERNEL_OK")
</pallas_src>

<mosaic_0001>
module attributes {stable_mosaic.version = 11 : i64} {
  func.func @_flash_attn_kernel(%arg0: i32, %arg1: i32, %arg2: i32, %arg3: memref<1x16x32xbf16, #tpu.memory_space<vmem>>, %arg4: memref<1x16x32xbf16, #tpu.memory_space<vmem>>, %arg5: memref<1x16x32xbf16, #tpu.memory_space<vmem>>, %arg6: memref<1x16x32xbf16, #tpu.memory_space<vmem>>, %arg7: memref<16x4xf32, #tpu.memory_space<vmem>>, %arg8: memref<16x4xf32, #tpu.memory_space<vmem>>, %arg9: memref<16x32xf32, #tpu.memory_space<vmem>>) attributes {dimension_semantics = [#tpu.dimension_semantics<parallel>, #tpu.dimension_semantics<parallel>, #tpu.dimension_semantics<arbitrary>], iteration_bounds = array<i64: 2, 1, 1>, scalar_prefetch = 0 : i64, scratch_operands = 3 : i64, tpu.core_type = #tpu.core_type<tc>, window_params = [{transform_indices = @transform_0, window_bounds = array<i64: 1, 16, 32>}, {transform_indices = @transform_1, window_bounds = array<i64: 1, 16, 32>}, {transform_indices = @transform_2, window_bounds = array<i64: 1, 16, 32>}, {transform_indices = @transform_3, window_bounds = array<i64: 1, 16, 32>}]} {
    %c0_i32 = arith.constant 0 : i32
    %0 = arith.cmpi eq, %arg2, %c0_i32 : i32
    %1 = arith.extui %0 : i1 to i32
    %c0_i32_0 = arith.constant 0 : i32
    %2 = arith.cmpi ne, %1, %c0_i32_0 : i32
    scf.if %2 {
      %cst = arith.constant -1.000000e+30 : f32
      %16 = vector.broadcast %cst : f32 to vector<16x4xf32>
      %c0 = arith.constant 0 : index
      %c0_6 = arith.constant 0 : index
      %17 = vector.load %arg7[%c0, %c0_6] : memref<16x4xf32, #tpu.memory_space<vmem>>, vector<16x4xf32>
      tpu.vector_store %arg7[%c0, %c0_6], %16 {strides = array<i32>} : memref<16x4xf32, #tpu.memory_space<vmem>>, vector<16x4xf32>,
      %cst_7 = arith.constant 0.000000e+00 : f32
      %18 = vector.broadcast %cst_7 : f32 to vector<16x4xf32>
      %c0_8 = arith.constant 0 : index
      %c0_9 = arith.constant 0 : index
      %19 = vector.load %arg8[%c0_8, %c0_9] : memref<16x4xf32, #tpu.memory_space<vmem>>, vector<16x4xf32>
      tpu.vector_store %arg8[%c0_8, %c0_9], %18 {strides = array<i32>} : memref<16x4xf32, #tpu.memory_space<vmem>>, vector<16x4xf32>,
      %cst_10 = arith.constant 0.000000e+00 : f32
      %20 = vector.broadcast %cst_10 : f32 to vector<16x32xf32>
      %c0_11 = arith.constant 0 : index
      %c0_12 = arith.constant 0 : index
      %21 = vector.load %arg9[%c0_11, %c0_12] : memref<16x32xf32, #tpu.memory_space<vmem>>, vector<16x32xf32>
      tpu.vector_store %arg9[%c0_11, %c0_12], %20 {strides = array<i32>} : memref<16x32xf32, #tpu.memory_space<vmem>>, vector<16x32xf32>,
    } else {
    }
    %c1_i32 = arith.constant 1 : i32
    %3 = arith.muli %arg1, %c1_i32 : i32
    %c1_i32_1 = arith.constant 1 : i32
    %4 = arith.addi %3, %c1_i32_1 : i32
    %5 = arith.cmpi slt, %arg2, %3 : i32
    %6 = arith.extui %5 : i1 to i32
    %c0_i32_2 = arith.constant 0 : i32
    %7 = arith.cmpi ne, %6, %c0_i32_2 : i32
    scf.if %7 {
      %c0 = arith.constant 0 : index
      %c0_6 = arith.constant 0 : index
      %c0_7 = arith.constant 0 : index
      %16 = vector.load %arg3[%c0, %c0_6, %c0_7] : memref<1x16x32xbf16, #tpu.memory_space<vmem>>, vector<1x16x32xbf16>
      %17 = vector.shape_cast %16 : vector<1x16x32xbf16> to vector<16x32xbf16>
      %c0_8 = arith.constant 0 : index
      %c0_9 = arith.constant 0 : index
      %c0_10 = arith.constant 0 : index
      %18 = vector.load %arg4[%c0_8, %c0_9, %c0_10] : memref<1x16x32xbf16, #tpu.memory_space<vmem>>, vector<1x16x32xbf16>
      %19 = vector.shape_cast %18 : vector<1x16x32xbf16> to vector<16x32xbf16>
      %c0_11 = arith.constant 0 : index
      %c0_12 = arith.constant 0 : index
      %c0_13 = arith.constant 0 : index
      %20 = vector.load %arg5[%c0_11, %c0_12, %c0_13] : memref<1x16x32xbf16, #tpu.memory_space<vmem>>, vector<1x16x32xbf16>
      %21 = vector.shape_cast %20 : vector<1x16x32xbf16> to vector<16x32xbf16>
      %c0_14 = arith.constant 0 : index
      %c0_15 = arith.constant 0 : index
      %22 = vector.load %arg7[%c0_14, %c0_15] : memref<16x4xf32, #tpu.memory_space<vmem>>, vector<16x4xf32>
      %c0_16 = arith.constant 0 : index
      %c0_17 = arith.constant 0 : index
      %23 = vector.load %arg8[%c0_16, %c0_17] : memref<16x4xf32, #tpu.memory_space<vmem>>, vector<16x4xf32>
      %24 = vector.extract_strided_slice %17 {offsets = [0, 0], sizes = [16, 8], strides = [1, 1]} : vector<16x32xbf16> to vector<16x8xbf16>
      %25 = vector.extract_strided_slice %19 {offsets = [0, 0], sizes = [16, 8], strides = [1, 1]} : vector<16x32xbf16> to vector<16x8xbf16>
      %cst = arith.constant dense<0.000000e+00> : vector<16x16xf32>
      %26 = tpu.matmul %24, %25, %cst {dimension_numbers = #tpu.dot_dimension_numbers<[1], [1], [0], [0], [0, 0, 1, 0], [], []>} : vector<16x8xbf16>, vector<16x8xbf16>, vector<16x16xf32> -> vector<16x16xf32>
      %27 = vector.extract_strided_slice %22 {offsets = [0, 0], sizes = [16, 1], strides = [1, 1]} : vector<16x4xf32> to vector<16x1xf32>
      %cst_18 = arith.constant dense<0xFF800000> : vector<16xf32>
      %28 = vector.multi_reduction <maximumf>, %26, %cst_18 [1] : vector<16x16xf32> to vector<16xf32>
      %29 = vector.shape_cast %28 : vector<16xf32> to vector<16x1xf32>
      %30 = arith.maximumf %27, %29 : vector<16x1xf32>
      %31 = arith.subf %27, %30 : vector<16x1xf32>
      %32 = math.exp %31 : vector<16x1xf32>
      %33 = vector.broadcast %30 : vector<16x1xf32> to vector<16x16xf32>
      %34 = arith.subf %26, %33 : vector<16x16xf32>
      %35 = math.exp %34 : vector<16x16xf32>
      %36 = vector.extract_strided_slice %23 {offsets = [0, 0], sizes = [16, 1], strides = [1, 1]} : vector<16x4xf32> to vector<16x1xf32>
      %37 = arith.mulf %32, %36 : vector<16x1xf32>
      %cst_19 = arith.constant dense<0.000000e+00> : vector<16xf32>
      %38 = vector.multi_reduction <add>, %35, %cst_19 [1] : vector<16x16xf32> to vector<16xf32>
      %39 = vector.shape_cast %38 : vector<16xf32> to vector<16x1xf32>
      %40 = arith.addf %37, %39 : vector<16x1xf32>
      %41 = arith.truncf %35 : vector<16x16xf32> to vector<16x16xbf16>
      %42 = vector.extract_strided_slice %21 {offsets = [0, 0], sizes = [16, 8], strides = [1, 1]} : vector<16x32xbf16> to vector<16x8xbf16>
      %cst_20 = arith.constant dense<0.000000e+00> : vector<16x8xf32>
      %43 = tpu.matmul %41, %42, %cst_20 {dimension_numbers = #tpu.dot_dimension_numbers<[1], [0], [0], [1], [0, 0, 1, 1], [], []>} : vector<16x16xbf16>, vector<16x8xbf16>, vector<16x8xf32> -> vector<16x8xf32>
      %44 = vector.shape_cast %32 : vector<16x1xf32> to vector<16x1xf32>
      %45 = vector.broadcast %44 : vector<16x1xf32> to vector<16x8xf32>
      %46 = vector.extract_strided_slice %17 {offsets = [0, 8], sizes = [16, 8], strides = [1, 1]} : vector<16x32xbf16> to vector<16x8xbf16>
      %47 = vector.extract_strided_slice %19 {offsets = [0, 8], sizes = [16, 8], strides = [1, 1]} : vector<16x32xbf16> to vector<16x8xbf16>
      %cst_21 = arith.constant dense<0.000000e+00> : vector<16x16xf32>
      %48 = tpu.matmul %46, %47, %cst_21 {dimension_numbers = #tpu.dot_dimension_numbers<[1], [1], [0], [0], [0, 0, 1, 0], [], []>} : vector<16x8xbf16>, vector<16x8xbf16>, vector<16x16xf32> -> vector<16x16xf32>
      %49 = vector.extract_strided_slice %22 {offsets = [0, 1], sizes = [16, 1], strides = [1, 1]} : vector<16x4xf32> to vector<16x1xf32>
      %cst_22 = arith.constant dense<0xFF800000> : vector<16xf32>
      %50 = vector.multi_reduction <maximumf>, %48, %cst_22 [1] : vector<16x16xf32> to vector<16xf32>
      %51 = vector.shape_cast %50 : vector<16xf32> to vector<16x1xf32>
      %52 = arith.maximumf %49, %51 : vector<16x1xf32>
      %53 = arith.subf %49, %52 : vector<16x1xf32>
      %54 = math.exp %53 : vector<16x1xf32>
      %55 = vector.broadcast %52 : vector<16x1xf32> to vector<16x16xf32>
      %56 = arith.subf %48, %55 : vector<16x16xf32>
      %57 = math.exp %56 : vector<16x16xf32>
      %58 = vector.extract_strided_slice %23 {offsets = [0, 1], sizes = [16, 1], strides = [1, 1]} : vector<16x4xf32> to vector<16x1xf32>
      %59 = arith.mulf %54, %58 : vector<16x1xf32>
      %cst_23 = arith.constant dense<0.000000e+00> : vector<16xf32>
      %60 = vector.multi_reduction <add>, %57, %cst_23 [1] : vector<16x16xf32> to vector<16xf32>
      %61 = vector.shape_cast %60 : vector<16xf32> to vector<16x1xf32>
      %62 = arith.addf %59, %61 : vector<16x1xf32>
      %63 = arith.truncf %57 : vector<16x16xf32> to vector<16x16xbf16>
      %64 = vector.extract_strided_slice %21 {offsets = [0, 8], sizes = [16, 8], strides = [1, 1]} : vector<16x32xbf16> to vector<16x8xbf16>
      %cst_24 = arith.constant dense<0.000000e+00> : vector<16x8xf32>
      %65 = tpu.matmul %63, %64, %cst_24 {dimension_numbers = #tpu.dot_dimension_numbers<[1], [0], [0], [1], [0, 0, 1, 1], [], []>} : vector<16x16xbf16>, vector<16x8xbf16>, vector<16x8xf32> -> vector<16x8xf32>
      %66 = vector.shape_cast %54 : vector<16x1xf32> to vector<16x1xf32>
      %67 = vector.broadcast %66 : vector<16x1xf32> to vector<16x8xf32>
      %68 = vector.extract_strided_slice %17 {offsets = [0, 16], sizes = [16, 8], strides = [1, 1]} : vector<16x32xbf16> to vector<16x8xbf16>
      %69 = vector.extract_strided_slice %19 {offsets = [0, 16], sizes = [16, 8], strides = [1, 1]} : vector<16x32xbf16> to vector<16x8xbf16>
      %cst_25 = arith.constant dense<0.000000e+00> : vector<16x16xf32>
      %70 = tpu.matmul %68, %69, %cst_25 {dimension_numbers = #tpu.dot_dimension_numbers<[1], [1], [0], [0], [0, 0, 1, 0], [], []>} : vector<16x8xbf16>, vector<16x8xbf16>, vector<16x16xf32> -> vector<16x16xf32>
      %71 = vector.extract_strided_slice %22 {offsets = [0, 2], sizes = [16, 1], strides = [1, 1]} : vector<16x4xf32> to vector<16x1xf32>
      %cst_26 = arith.constant dense<0xFF800000> : vector<16xf32>
      %72 = vector.multi_reduction <maximumf>, %70, %cst_26 [1] : vector<16x16xf32> to vector<16xf32>
      %73 = vector.shape_cast %72 : vector<16xf32> to vector<16x1xf32>
      %74 = arith.maximumf %71, %73 : vector<16x1xf32>
      %75 = arith.subf %71, %74 : vector<16x1xf32>
      %76 = math.exp %75 : vector<16x1xf32>
      %77 = vector.broadcast %74 : vector<16x1xf32> to vector<16x16xf32>
      %78 = arith.subf %70, %77 : vector<16x16xf32>
      %79 = math.exp %78 : vector<16x16xf32>
      %80 = vector.extract_strided_slice %23 {offsets = [0, 2], sizes = [16, 1], strides = [1, 1]} : vector<16x4xf32> to vector<16x1xf32>
      %81 = arith.mulf %76, %80 : vector<16x1xf32>
      %cst_27 = arith.constant dense<0.000000e+00> : vector<16xf32>
      %82 = vector.multi_reduction <add>, %79, %cst_27 [1] : vector<16x16xf32> to vector<16xf32>
      %83 = vector.shape_cast %82 : vector<16xf32> to vector<16x1xf32>
      %84 = arith.addf %81, %83 : vector<16x1xf32>
      %85 = arith.truncf %79 : vector<16x16xf32> to vector<16x16xbf16>
      %86 = vector.extract_strided_slice %21 {offsets = [0, 16], sizes = [16, 8], strides = [1, 1]} : vector<16x32xbf16> to vector<16x8xbf16>
      %cst_28 = arith.constant dense<0.000000e+00> : vector<16x8xf32>
      %87 = tpu.matmul %85, %86, %cst_28 {dimension_numbers = #tpu.dot_dimension_numbers<[1], [0], [0], [1], [0, 0, 1, 1], [], []>} : vector<16x16xbf16>, vector<16x8xbf16>, vector<16x8xf32> -> vector<16x8xf32>
      %88 = vector.shape_cast %76 : vector<16x1xf32> to vector<16x1xf32>
      %89 = vector.broadcast %88 : vector<16x1xf32> to vector<16x8xf32>
      %90 = vector.extract_strided_slice %17 {offsets = [0, 24], sizes = [16, 8], strides = [1, 1]} : vector<16x32xbf16> to vector<16x8xbf16>
      %91 = vector.extract_strided_slice %19 {offsets = [0, 24], sizes = [16, 8], strides = [1, 1]} : vector<16x32xbf16> to vector<16x8xbf16>
      %cst_29 = arith.constant dense<0.000000e+00> : vector<16x16xf32>
      %92 = tpu.matmul %90, %91, %cst_29 {dimension_numbers = #tpu.dot_dimension_numbers<[1], [1], [0], [0], [0, 0, 1, 0], [], []>} : vector<16x8xbf16>, vector<16x8xbf16>, vector<16x16xf32> -> vector<16x16xf32>
      %93 = vector.extract_strided_slice %22 {offsets = [0, 3], sizes = [16, 1], strides = [1, 1]} : vector<16x4xf32> to vector<16x1xf32>
      %cst_30 = arith.constant dense<0xFF800000> : vector<16xf32>
      %94 = vector.multi_reduction <maximumf>, %92, %cst_30 [1] : vector<16x16xf32> to vector<16xf32>
      %95 = vector.shape_cast %94 : vector<16xf32> to vector<16x1xf32>
      %96 = arith.maximumf %93, %95 : vector<16x1xf32>
      %97 = arith.subf %93, %96 : vector<16x1xf32>
      %98 = math.exp %97 : vector<16x1xf32>
      %99 = vector.broadcast %96 : vector<16x1xf32> to vector<16x16xf32>
      %100 = arith.subf %92, %99 : vector<16x16xf32>
      %101 = math.exp %100 : vector<16x16xf32>
      %102 = vector.extract_strided_slice %23 {offsets = [0, 3], sizes = [16, 1], strides = [1, 1]} : vector<16x4xf32> to vector<16x1xf32>
      %103 = arith.mulf %98, %102 : vector<16x1xf32>
      %cst_31 = arith.constant dense<0.000000e+00> : vector<16xf32>
      %104 = vector.multi_reduction <add>, %101, %cst_31 [1] : vector<16x16xf32> to vector<16xf32>
      %105 = vector.shape_cast %104 : vector<16xf32> to vector<16x1xf32>
      %106 = arith.addf %103, %105 : vector<16x1xf32>
      %107 = arith.truncf %101 : vector<16x16xf32> to vector<16x16xbf16>
      %108 = vector.extract_strided_slice %21 {offsets = [0, 24], sizes = [16, 8], strides = [1, 1]} : vector<16x32xbf16> to vector<16x8xbf16>
      %cst_32 = arith.constant dense<0.000000e+00> : vector<16x8xf32>
      %109 = tpu.matmul %107, %108, %cst_32 {dimension_numbers = #tpu.dot_dimension_numbers<[1], [0], [0], [1], [0, 0, 1, 1], [], []>} : vector<16x16xbf16>, vector<16x8xbf16>, vector<16x8xf32> -> vector<16x8xf32>
      %110 = vector.shape_cast %98 : vector<16x1xf32> to vector<16x1xf32>
      %111 = vector.broadcast %110 : vector<16x1xf32> to vector<16x8xf32>
      %112 = tpu.concatenate %30, %52, %74, %96 in 1 : vector<16x1xf32>, vector<16x1xf32>, vector<16x1xf32>, vector<16x1xf32> -> vector<16x4xf32>
      %c0_33 = arith.constant 0 : index
      %c0_34 = arith.constant 0 : index
      %113 = vector.load %arg7[%c0_33, %c0_34] : memref<16x4xf32, #tpu.memory_space<vmem>>, vector<16x4xf32>
      tpu.vector_store %arg7[%c0_33, %c0_34], %112 {strides = array<i32>} : memref<16x4xf32, #tpu.memory_space<vmem>>, vector<16x4xf32>,
      %114 = tpu.concatenate %40, %62, %84, %106 in 1 : vector<16x1xf32>, vector<16x1xf32>, vector<16x1xf32>, vector<16x1xf32> -> vector<16x4xf32>
      %c0_35 = arith.constant 0 : index
      %c0_36 = arith.constant 0 : index
      %115 = vector.load %arg8[%c0_35, %c0_36] : memref<16x4xf32, #tpu.memory_space<vmem>>, vector<16x4xf32>
      tpu.vector_store %arg8[%c0_35, %c0_36], %114 {strides = array<i32>} : memref<16x4xf32, #tpu.memory_space<vmem>>, vector<16x4xf32>,
      %116 = tpu.concatenate %45, %67, %89, %111 in 1 : vector<16x8xf32>, vector<16x8xf32>, vector<16x8xf32>, vector<16x8xf32> -> vector<16x32xf32>
      %c0_37 = arith.constant 0 : index
      %c0_38 = arith.constant 0 : index
      %117 = vector.load %arg9[%c0_37, %c0_38] : memref<16x32xf32, #tpu.memory_space<vmem>>, vector<16x32xf32>
      %118 = arith.mulf %116, %117 : vector<16x32xf32>
      %119 = tpu.concatenate %43, %65, %87, %109 in 1 : vector<16x8xf32>, vector<16x8xf32>, vector<16x8xf32>, vector<16x8xf32> -> vector<16x32xf32>
      %120 = arith.addf %118, %119 : vector<16x32xf32>
      %c0_39 = arith.constant 0 : index
      %c0_40 = arith.constant 0 : index
      %121 = vector.load %arg9[%c0_39, %c0_40] : memref<16x32xf32, #tpu.memory_space<vmem>>, vector<16x32xf32>
      tpu.vector_store %arg9[%c0_39, %c0_40], %120 {strides = array<i32>} : memref<16x32xf32, #tpu.memory_space<vmem>>, vector<16x32xf32>,
    } else {
    }
    %8 = arith.cmpi sge, %arg2, %3 : i32
    %9 = arith.cmpi slt, %arg2, %4 : i32
    %10 = arith.andi %8, %9 : i1
    %11 = arith.extui %10 : i1 to i32
    %c0_i32_3 = arith.constant 0 : i32
    %12 = arith.cmpi ne, %11, %c0_i32_3 : i32
    scf.if %12 {
      %c0 = arith.constant 0 : index
      %c0_6 = arith.constant 0 : index
      %c0_7 = arith.constant 0 : index
      %16 = vector.load %arg3[%c0, %c0_6, %c0_7] : memref<1x16x32xbf16, #tpu.memory_space<vmem>>, vector<1x16x32xbf16>
      %17 = vector.shape_cast %16 : vector<1x16x32xbf16> to vector<16x32xbf16>
      %c0_8 = arith.constant 0 : index
      %c0_9 = arith.constant 0 : index
      %c0_10 = arith.constant 0 : index
      %18 = vector.load %arg4[%c0_8, %c0_9, %c0_10] : memref<1x16x32xbf16, #tpu.memory_space<vmem>>, vector<1x16x32xbf16>
      %19 = vector.shape_cast %18 : vector<1x16x32xbf16> to vector<16x32xbf16>
      %c0_11 = arith.constant 0 : index
      %c0_12 = arith.constant 0 : index
      %c0_13 = arith.constant 0 : index
      %20 = vector.load %arg5[%c0_11, %c0_12, %c0_13] : memref<1x16x32xbf16, #tpu.memory_space<vmem>>, vector<1x16x32xbf16>
      %21 = vector.shape_cast %20 : vector<1x16x32xbf16> to vector<16x32xbf16>
      %c0_14 = arith.constant 0 : index
      %c0_15 = arith.constant 0 : index
      %22 = vector.load %arg7[%c0_14, %c0_15] : memref<16x4xf32, #tpu.memory_space<vmem>>, vector<16x4xf32>
      %c0_16 = arith.constant 0 : index
      %c0_17 = arith.constant 0 : index
      %23 = vector.load %arg8[%c0_16, %c0_17] : memref<16x4xf32, #tpu.memory_space<vmem>>, vector<16x4xf32>
      %24 = tpu.iota {dimensions = array<i32: 0>} : vector<16x16xi32>
      %c16_i32 = arith.constant 16 : i32
      %25 = arith.muli %arg1, %c16_i32 : i32
      %26 = vector.broadcast %25 : i32 to vector<16x16xi32>
      %27 = arith.addi %24, %26 : vector<16x16xi32>
      %28 = tpu.iota {dimensions = array<i32: 1>} : vector<16x16xi32>
      %c16_i32_18 = arith.constant 16 : i32
      %29 = arith.muli %arg2, %c16_i32_18 : i32
      %30 = vector.broadcast %29 : i32 to vector<16x16xi32>
      %31 = arith.addi %28, %30 : vector<16x16xi32>
      %32 = arith.cmpi sge, %27, %31 : vector<16x16xi32>
      %33 = vector.extract_strided_slice %17 {offsets = [0, 0], sizes = [16, 8], strides = [1, 1]} : vector<16x32xbf16> to vector<16x8xbf16>
      %34 = vector.extract_strided_slice %19 {offsets = [0, 0], sizes = [16, 8], strides = [1, 1]} : vector<16x32xbf16> to vector<16x8xbf16>
      %cst = arith.constant dense<0.000000e+00> : vector<16x16xf32>
      %35 = tpu.matmul %33, %34, %cst {dimension_numbers = #tpu.dot_dimension_numbers<[1], [1], [0], [0], [0, 0, 1, 0], [], []>} : vector<16x8xbf16>, vector<16x8xbf16>, vector<16x16xf32> -> vector<16x16xf32>
      %cst_19 = arith.constant -1.000000e+30 : f32
      %36 = vector.broadcast %cst_19 : f32 to vector<16x16xf32>
      %37 = arith.select %32, %35, %36 : vector<16x16xi1>, vector<16x16xf32>
      %38 = vector.extract_strided_slice %22 {offsets = [0, 0], sizes = [16, 1], strides = [1, 1]} : vector<16x4xf32> to vector<16x1xf32>
      %cst_20 = arith.constant dense<0xFF800000> : vector<16xf32>
      %39 = vector.multi_reduction <maximumf>, %37, %cst_20 [1] : vector<16x16xf32> to vector<16xf32>
      %40 = vector.shape_cast %39 : vector<16xf32> to vector<16x1xf32>
      %41 = arith.maximumf %38, %40 : vector<16x1xf32>
      %42 = arith.subf %38, %41 : vector<16x1xf32>
      %43 = math.exp %42 : vector<16x1xf32>
      %44 = vector.broadcast %41 : vector<16x1xf32> to vector<16x16xf32>
      %45 = arith.subf %37, %44 : vector<16x16xf32>
      %46 = math.exp %45 : vector<16x16xf32>
      %47 = vector.extract_strided_slice %23 {offsets = [0, 0], sizes = [16, 1], strides = [1, 1]} : vector<16x4xf32> to vector<16x1xf32>
      %48 = arith.mulf %43, %47 : vector<16x1xf32>
      %cst_21 = arith.constant dense<0.000000e+00> : vector<16xf32>
      %49 = vector.multi_reduction <add>, %46, %cst_21 [1] : vector<16x16xf32> to vector<16xf32>
      %50 = vector.shape_cast %49 : vector<16xf32> to vector<16x1xf32>
      %51 = arith.addf %48, %50 : vector<16x1xf32>
      %52 = arith.truncf %46 : vector<16x16xf32> to vector<16x16xbf16>
      %53 = vector.extract_strided_slice %21 {offsets = [0, 0], sizes = [16, 8], strides = [1, 1]} : vector<16x32xbf16> to vector<16x8xbf16>
      %cst_22 = arith.constant dense<0.000000e+00> : vector<16x8xf32>
      %54 = tpu.matmul %52, %53, %cst_22 {dimension_numbers = #tpu.dot_dimension_numbers<[1], [0], [0], [1], [0, 0, 1, 1], [], []>} : vector<16x16xbf16>, vector<16x8xbf16>, vector<16x8xf32> -> vector<16x8xf32>
      %55 = vector.shape_cast %43 : vector<16x1xf32> to vector<16x1xf32>
      %56 = vector.broadcast %55 : vector<16x1xf32> to vector<16x8xf32>
      %57 = vector.extract_strided_slice %17 {offsets = [0, 8], sizes = [16, 8], strides = [1, 1]} : vector<16x32xbf16> to vector<16x8xbf16>
      %58 = vector.extract_strided_slice %19 {offsets = [0, 8], sizes = [16, 8], strides = [1, 1]} : vector<16x32xbf16> to vector<16x8xbf16>
      %cst_23 = arith.constant dense<0.000000e+00> : vector<16x16xf32>
      %59 = tpu.matmul %57, %58, %cst_23 {dimension_numbers = #tpu.dot_dimension_numbers<[1], [1], [0], [0], [0, 0, 1, 0], [], []>} : vector<16x8xbf16>, vector<16x8xbf16>, vector<16x16xf32> -> vector<16x16xf32>
      %cst_24 = arith.constant -1.000000e+30 : f32
      %60 = vector.broadcast %cst_24 : f32 to vector<16x16xf32>
      %61 = arith.select %32, %59, %60 : vector<16x16xi1>, vector<16x16xf32>
      %62 = vector.extract_strided_slice %22 {offsets = [0, 1], sizes = [16, 1], strides = [1, 1]} : vector<16x4xf32> to vector<16x1xf32>
      %cst_25 = arith.constant dense<0xFF800000> : vector<16xf32>
      %63 = vector.multi_reduction <maximumf>, %61, %cst_25 [1] : vector<16x16xf32> to vector<16xf32>
      %64 = vector.shape_cast %63 : vector<16xf32> to vector<16x1xf32>
      %65 = arith.maximumf %62, %64 : vector<16x1xf32>
      %66 = arith.subf %62, %65 : vector<16x1xf32>
      %67 = math.exp %66 : vector<16x1xf32>
      %68 = vector.broadcast %65 : vector<16x1xf32> to vector<16x16xf32>
      %69 = arith.subf %61, %68 : vector<16x16xf32>
      %70 = math.exp %69 : vector<16x16xf32>
      %71 = vector.extract_strided_slice %23 {offsets = [0, 1], sizes = [16, 1], strides = [1, 1]} : vector<16x4xf32> to vector<16x1xf32>
      %72 = arith.mulf %67, %71 : vector<16x1xf32>
      %cst_26 = arith.constant dense<0.000000e+00> : vector<16xf32>
      %73 = vector.multi_reduction <add>, %70, %cst_26 [1] : vector<16x16xf32> to vector<16xf32>
      %74 = vector.shape_cast %73 : vector<16xf32> to vector<16x1xf32>
      %75 = arith.addf %72, %74 : vector<16x1xf32>
      %76 = arith.truncf %70 : vector<16x16xf32> to vector<16x16xbf16>
      %77 = vector.extract_strided_slice %21 {offsets = [0, 8], sizes = [16, 8], strides = [1, 1]} : vector<16x32xbf16> to vector<16x8xbf16>
      %cst_27 = arith.constant dense<0.000000e+00> : vector<16x8xf32>
      %78 = tpu.matmul %76, %77, %cst_27 {dimension_numbers = #tpu.dot_dimension_numbers<[1], [0], [0], [1], [0, 0, 1, 1], [], []>} : vector<16x16xbf16>, vector<16x8xbf16>, vector<16x8xf32> -> vector<16x8xf32>
      %79 = vector.shape_cast %67 : vector<16x1xf32> to vector<16x1xf32>
      %80 = vector.broadcast %79 : vector<16x1xf32> to vector<16x8xf32>
      %81 = vector.extract_strided_slice %17 {offsets = [0, 16], sizes = [16, 8], strides = [1, 1]} : vector<16x32xbf16> to vector<16x8xbf16>
      %82 = vector.extract_strided_slice %19 {offsets = [0, 16], sizes = [16, 8], strides = [1, 1]} : vector<16x32xbf16> to vector<16x8xbf16>
      %cst_28 = arith.constant dense<0.000000e+00> : vector<16x16xf32>
      %83 = tpu.matmul %81, %82, %cst_28 {dimension_numbers = #tpu.dot_dimension_numbers<[1], [1], [0], [0], [0, 0, 1, 0], [], []>} : vector<16x8xbf16>, vector<16x8xbf16>, vector<16x16xf32> -> vector<16x16xf32>
      %cst_29 = arith.constant -1.000000e+30 : f32
      %84 = vector.broadcast %cst_29 : f32 to vector<16x16xf32>
      %85 = arith.select %32, %83, %84 : vector<16x16xi1>, vector<16x16xf32>
      %86 = vector.extract_strided_slice %22 {offsets = [0, 2], sizes = [16, 1], strides = [1, 1]} : vector<16x4xf32> to vector<16x1xf32>
      %cst_30 = arith.constant dense<0xFF800000> : vector<16xf32>
      %87 = vector.multi_reduction <maximumf>, %85, %cst_30 [1] : vector<16x16xf32> to vector<16xf32>
      %88 = vector.shape_cast %87 : vector<16xf32> to vector<16x1xf32>
      %89 = arith.maximumf %86, %88 : vector<16x1xf32>
      %90 = arith.subf %86, %89 : vector<16x1xf32>
      %91 = math.exp %90 : vector<16x1xf32>
      %92 = vector.broadcast %89 : vector<16x1xf32> to vector<16x16xf32>
      %93 = arith.subf %85, %92 : vector<16x16xf32>
      %94 = math.exp %93 : vector<16x16xf32>
      %95 = vector.extract_strided_slice %23 {offsets = [0, 2], sizes = [16, 1], strides = [1, 1]} : vector<16x4xf32> to vector<16x1xf32>
      %96 = arith.mulf %91, %95 : vector<16x1xf32>
      %cst_31 = arith.constant dense<0.000000e+00> : vector<16xf32>
      %97 = vector.multi_reduction <add>, %94, %cst_31 [1] : vector<16x16xf32> to vector<16xf32>
      %98 = vector.shape_cast %97 : vector<16xf32> to vector<16x1xf32>
      %99 = arith.addf %96, %98 : vector<16x1xf32>
      %100 = arith.truncf %94 : vector<16x16xf32> to vector<16x16xbf16>
      %101 = vector.extract_strided_slice %21 {offsets = [0, 16], sizes = [16, 8], strides = [1, 1]} : vector<16x32xbf16> to vector<16x8xbf16>
      %cst_32 = arith.constant dense<0.000000e+00> : vector<16x8xf32>
      %102 = tpu.matmul %100, %101, %cst_32 {dimension_numbers = #tpu.dot_dimension_numbers<[1], [0], [0], [1], [0, 0, 1, 1], [], []>} : vector<16x16xbf16>, vector<16x8xbf16>, vector<16x8xf32> -> vector<16x8xf32>
      %103 = vector.shape_cast %91 : vector<16x1xf32> to vector<16x1xf32>
      %104 = vector.broadcast %103 : vector<16x1xf32> to vector<16x8xf32>
      %105 = vector.extract_strided_slice %17 {offsets = [0, 24], sizes = [16, 8], strides = [1, 1]} : vector<16x32xbf16> to vector<16x8xbf16>
      %106 = vector.extract_strided_slice %19 {offsets = [0, 24], sizes = [16, 8], strides = [1, 1]} : vector<16x32xbf16> to vector<16x8xbf16>
      %cst_33 = arith.constant dense<0.000000e+00> : vector<16x16xf32>
      %107 = tpu.matmul %105, %106, %cst_33 {dimension_numbers = #tpu.dot_dimension_numbers<[1], [1], [0], [0], [0, 0, 1, 0], [], []>} : vector<16x8xbf16>, vector<16x8xbf16>, vector<16x16xf32> -> vector<16x16xf32>
      %cst_34 = arith.constant -1.000000e+30 : f32
      %108 = vector.broadcast %cst_34 : f32 to vector<16x16xf32>
      %109 = arith.select %32, %107, %108 : vector<16x16xi1>, vector<16x16xf32>
      %110 = vector.extract_strided_slice %22 {offsets = [0, 3], sizes = [16, 1], strides = [1, 1]} : vector<16x4xf32> to vector<16x1xf32>
      %cst_35 = arith.constant dense<0xFF800000> : vector<16xf32>
      %111 = vector.multi_reduction <maximumf>, %109, %cst_35 [1] : vector<16x16xf32> to vector<16xf32>
      %112 = vector.shape_cast %111 : vector<16xf32> to vector<16x1xf32>
      %113 = arith.maximumf %110, %112 : vector<16x1xf32>
      %114 = arith.subf %110, %113 : vector<16x1xf32>
      %115 = math.exp %114 : vector<16x1xf32>
      %116 = vector.broadcast %113 : vector<16x1xf32> to vector<16x16xf32>
      %117 = arith.subf %109, %116 : vector<16x16xf32>
      %118 = math.exp %117 : vector<16x16xf32>
      %119 = vector.extract_strided_slice %23 {offsets = [0, 3], sizes = [16, 1], strides = [1, 1]} : vector<16x4xf32> to vector<16x1xf32>
      %120 = arith.mulf %115, %119 : vector<16x1xf32>
      %cst_36 = arith.constant dense<0.000000e+00> : vector<16xf32>
      %121 = vector.multi_reduction <add>, %118, %cst_36 [1] : vector<16x16xf32> to vector<16xf32>
      %122 = vector.shape_cast %121 : vector<16xf32> to vector<16x1xf32>
      %123 = arith.addf %120, %122 : vector<16x1xf32>
      %124 = arith.truncf %118 : vector<16x16xf32> to vector<16x16xbf16>
      %125 = vector.extract_strided_slice %21 {offsets = [0, 24], sizes = [16, 8], strides = [1, 1]} : vector<16x32xbf16> to vector<16x8xbf16>
      %cst_37 = arith.constant dense<0.000000e+00> : vector<16x8xf32>
      %126 = tpu.matmul %124, %125, %cst_37 {dimension_numbers = #tpu.dot_dimension_numbers<[1], [0], [0], [1], [0, 0, 1, 1], [], []>} : vector<16x16xbf16>, vector<16x8xbf16>, vector<16x8xf32> -> vector<16x8xf32>
      %127 = vector.shape_cast %115 : vector<16x1xf32> to vector<16x1xf32>
      %128 = vector.broadcast %127 : vector<16x1xf32> to vector<16x8xf32>
      %129 = tpu.concatenate %41, %65, %89, %113 in 1 : vector<16x1xf32>, vector<16x1xf32>, vector<16x1xf32>, vector<16x1xf32> -> vector<16x4xf32>
      %c0_38 = arith.constant 0 : index
      %c0_39 = arith.constant 0 : index
      %130 = vector.load %arg7[%c0_38, %c0_39] : memref<16x4xf32, #tpu.memory_space<vmem>>, vector<16x4xf32>
      tpu.vector_store %arg7[%c0_38, %c0_39], %129 {strides = array<i32>} : memref<16x4xf32, #tpu.memory_space<vmem>>, vector<16x4xf32>,
      %131 = tpu.concatenate %51, %75, %99, %123 in 1 : vector<16x1xf32>, vector<16x1xf32>, vector<16x1xf32>, vector<16x1xf32> -> vector<16x4xf32>
      %c0_40 = arith.constant 0 : index
      %c0_41 = arith.constant 0 : index
      %132 = vector.load %arg8[%c0_40, %c0_41] : memref<16x4xf32, #tpu.memory_space<vmem>>, vector<16x4xf32>
      tpu.vector_store %arg8[%c0_40, %c0_41], %131 {strides = array<i32>} : memref<16x4xf32, #tpu.memory_space<vmem>>, vector<16x4xf32>,
      %133 = tpu.concatenate %56, %80, %104, %128 in 1 : vector<16x8xf32>, vector<16x8xf32>, vector<16x8xf32>, vector<16x8xf32> -> vector<16x32xf32>
      %c0_42 = arith.constant 0 : index
      %c0_43 = arith.constant 0 : index
      %134 = vector.load %arg9[%c0_42, %c0_43] : memref<16x32xf32, #tpu.memory_space<vmem>>, vector<16x32xf32>
      %135 = arith.mulf %133, %134 : vector<16x32xf32>
      %136 = tpu.concatenate %54, %78, %102, %126 in 1 : vector<16x8xf32>, vector<16x8xf32>, vector<16x8xf32>, vector<16x8xf32> -> vector<16x32xf32>
      %137 = arith.addf %135, %136 : vector<16x32xf32>
      %c0_44 = arith.constant 0 : index
      %c0_45 = arith.constant 0 : index
      %138 = vector.load %arg9[%c0_44, %c0_45] : memref<16x32xf32, #tpu.memory_space<vmem>>, vector<16x32xf32>
      tpu.vector_store %arg9[%c0_44, %c0_45], %137 {strides = array<i32>} : memref<16x32xf32, #tpu.memory_space<vmem>>, vector<16x32xf32>,
    } else {
    }
    %c0_i32_4 = arith.constant 0 : i32
    %13 = arith.cmpi eq, %arg2, %c0_i32_4 : i32
    %14 = arith.extui %13 : i1 to i32
    %c0_i32_5 = arith.constant 0 : i32
    %15 = arith.cmpi ne, %14, %c0_i32_5 : i32
    scf.if %15 {
      %c0 = arith.constant 0 : index
      %c0_6 = arith.constant 0 : index
      %16 = vector.load %arg8[%c0, %c0_6] : memref<16x4xf32, #tpu.memory_space<vmem>>, vector<16x4xf32>
      %17 = tpu.reciprocal %16 {approx = true} : vector<16x4xf32> -> vector<16x4xf32>
      %18 = vector.extract_strided_slice %17 {offsets = [0, 0], sizes = [16, 1], strides = [1, 1]} : vector<16x4xf32> to vector<16x1xf32>
      %19 = vector.shape_cast %18 : vector<16x1xf32> to vector<16x1xf32>
      %20 = vector.broadcast %19 : vector<16x1xf32> to vector<16x8xf32>
      %21 = vector.extract_strided_slice %17 {offsets = [0, 1], sizes = [16, 1], strides = [1, 1]} : vector<16x4xf32> to vector<16x1xf32>
      %22 = vector.shape_cast %21 : vector<16x1xf32> to vector<16x1xf32>
      %23 = vector.broadcast %22 : vector<16x1xf32> to vector<16x8xf32>
      %24 = vector.extract_strided_slice %17 {offsets = [0, 2], sizes = [16, 1], strides = [1, 1]} : vector<16x4xf32> to vector<16x1xf32>
      %25 = vector.shape_cast %24 : vector<16x1xf32> to vector<16x1xf32>
      %26 = vector.broadcast %25 : vector<16x1xf32> to vector<16x8xf32>
      %27 = vector.extract_strided_slice %17 {offsets = [0, 3], sizes = [16, 1], strides = [1, 1]} : vector<16x4xf32> to vector<16x1xf32>
      %28 = vector.shape_cast %27 : vector<16x1xf32> to vector<16x1xf32>
      %29 = vector.broadcast %28 : vector<16x1xf32> to vector<16x8xf32>
      %c0_7 = arith.constant 0 : index
      %c0_8 = arith.constant 0 : index
      %30 = vector.load %arg9[%c0_7, %c0_8] : memref<16x32xf32, #tpu.memory_space<vmem>>, vector<16x32xf32>
      %31 = tpu.concatenate %20, %23, %26, %29 in 1 : vector<16x8xf32>, vector<16x8xf32>, vector<16x8xf32>, vector<16x8xf32> -> vector<16x32xf32>
      %32 = arith.mulf %30, %31 : vector<16x32xf32>
      %33 = arith.truncf %32 : vector<16x32xf32> to vector<16x32xbf16>
      %c0_9 = arith.constant 0 : index
      %c0_10 = arith.constant 0 : index
      %c0_11 = arith.constant 0 : index
      %34 = vector.load %arg6[%c0_9, %c0_10, %c0_11] : memref<1x16x32xbf16, #tpu.memory_space<vmem>>, vector<1x16x32xbf16>
      %35 = vector.shape_cast %34 : vector<1x16x32xbf16> to vector<16x32xbf16>
      %36 = vector.shape_cast %33 : vector<16x32xbf16> to vector<1x16x32xbf16>
      tpu.vector_store %arg6[%c0_9, %c0_10, %c0_11], %36 {strides = array<i32>} : memref<1x16x32xbf16, #tpu.memory_space<vmem>>, vector<1x16x32xbf16>,
    } else {
    }
    return
  }
  func.func @transform_0(%arg0: i32, %arg1: i32, %arg2: i32) -> (i32, i32, i32) {
    %c0_i32 = arith.constant 0 : i32
    %c0_i32_0 = arith.constant 0 : i32
    return %arg0, %arg1, %c0_i32 : i32, i32, i32
  }
  func.func @transform_1(%arg0: i32, %arg1: i32, %arg2: i32) -> (i32, i32, i32) {
    %c1_i32 = arith.constant 1 : i32
    %0 = arith.addi %arg1, %c1_i32 : i32
    %c1_i32_0 = arith.constant 1 : i32
    %1 = arith.muli %0, %c1_i32_0 : i32
    %c1_i32_1 = arith.constant 1 : i32
    %2 = arith.subi %1, %c1_i32_1 : i32
    %3 = arith.minsi %arg2, %2 : i32
    %c0_i32 = arith.constant 0 : i32
    %c0_i32_2 = arith.constant 0 : i32
    return %arg0, %3, %c0_i32 : i32, i32, i32
  }
  func.func @transform_2(%arg0: i32, %arg1: i32, %arg2: i32) -> (i32, i32, i32) {
    %c1_i32 = arith.constant 1 : i32
    %0 = arith.addi %arg1, %c1_i32 : i32
    %c1_i32_0 = arith.constant 1 : i32
    %1 = arith.muli %0, %c1_i32_0 : i32
    %c1_i32_1 = arith.constant 1 : i32
    %2 = arith.subi %1, %c1_i32_1 : i32
    %3 = arith.minsi %arg2, %2 : i32
    %c0_i32 = arith.constant 0 : i32
    %c0_i32_2 = arith.constant 0 : i32
    return %arg0, %3, %c0_i32 : i32, i32, i32
  }
  func.func @transform_3(%arg0: i32, %arg1: i32, %arg2: i32) -> (i32, i32, i32) {
    %c0_i32 = arith.constant 0 : i32
    %c0_i32_0 = arith.constant 0 : i32
    return %arg0, %arg1, %c0_i32 : i32, i32, i32
  }
}

</mosaic_0001>

<llo_original>
// kernel: tpu_custom_call.1
$region0: #{tpu_custom_call.1}
  #allocation0 [shape = 'u32[]', space=smem, size = 0x4, offset = 0x4, fixed_abs, tag = 'smem constant byte address 0x4 - core index']
  #allocation1 [shape = 'u32[72,128]{1,0:T(1,128)}', space=vmem, size = 0x9000, scoped, tag = 'internal scratch']
  #allocation2 [shape = 'f32[16,4]{1,0:T(8,128)}', space=vmem, size = 0x2000, scoped, tag = 'scratch operand']
  #allocation3 [shape = 'f32[16,4]{1,0:T(8,128)}', space=vmem, size = 0x2000, scoped, tag = 'scratch operand']
  #allocation4 [shape = 'f32[16,32]{1,0:T(8,128)}', space=vmem, size = 0x2000, scoped, tag = 'scratch operand']
  %s0 = inlined_call_operand.hbm [shape: bf16[2,16,32], index: 0, kind: input, shape index: {}]
  %s1 = inlined_call_operand.hbm [shape: bf16[2,16,32], index: 1, kind: input, shape index: {}]
  %s2 = inlined_call_operand.hbm [shape: bf16[2,16,32], index: 2, kind: input, shape index: {}]
  %s3 = inlined_call_operand.hbm [shape: bf16[2,16,32], index: 3, kind: output, shape index: {}]
  %s4 = sld [smem:[#allocation0]]
  $region73: #{tpu_custom_call.1} parent=0
    _
  %s6 = ssub.s32 1, %s4
  %s7 = scalar_select 0, %s6, %s4
  $region1: #{tpu_custom_call.1} parent=0
    #allocation5 [shape = 'u8[8192]{0}', space=vmem, size = 0x2000, scoped, tag = 'input window, operand 0']
    #allocation6 [shape = 's32[2]{0}', space=sflag, size = 0x8, scoped, tag = 'scoped memory for tpu_custom_call.1']
    #allocation7 [shape = 's32[2]{0}', space=sflag, size = 0x8, scoped, tag = 'scoped memory for tpu_custom_call.1']
    #allocation8 [shape = 'u8[8192]{0}', space=vmem, size = 0x2000, scoped, tag = 'input window, operand 1']
    #allocation9 [shape = 's32[2]{0}', space=sflag, size = 0x8, scoped, tag = 'scoped memory for tpu_custom_call.1']
    #allocation10 [shape = 'u8[8192]{0}', space=vmem, size = 0x2000, scoped, tag = 'input window, operand 2']
    #allocation11 [shape = 'u8[8192]{0}', space=vmem, size = 0x2000, scoped, tag = 'output window, operand 0']
    %8 = vsyncpa [#allocation6], 0
    %s9 = scalar_lea.sflag [#allocation6], 1
    %10 = vsyncpa %s9, 0
    %11 = vsyncpa [#allocation9], 0
    %s12 = scalar_lea.sflag [#allocation9], 1
    %13 = vsyncpa %s12, 0
    %14 = vsyncpa [#allocation7], 0
    %s15 = scalar_lea.sflag [#allocation7], 1
    %16 = vsyncpa %s15, 0
    loop: start=0, step=1, limit=4
    $region2: #{tpu_custom_call.1} parent=1 // loop_pre_header
      _
    $region3: #{tpu_custom_call.1} parent=1 // loop_header
      %s18 = sphi 0, %s22
      %p19 = scmp.ge.s32.totalorder %s18, 4
      %s25 = sphi 0, %s44
      %s26 = sphi 0, %s40
      %s27 = sphi 0, %s36
      %s28 = sphi 0, %s25
      %s29 = sphi 0, %s26
      %s30 = sphi 0, %s27
      %s31 = sphi 0, %s28
      %s32 = sphi 0, %s29
      %s33 = sphi 0, %s30
      %s49 = sphi 0, %s51
      %s52 = sphi 0, %s49
      %s53 = sphi 0, %s52
      %s69 = sphi 0, %s53
      %s81 = sphi 0, %s83
      %s84 = sphi 0, %s81
      %s85 = sphi 0, %s84
      %s101 = sphi 0, %s85
      %s113 = sphi 0, %s115
      %s116 = sphi 0, %s113
      %s117 = sphi 0, %s116
      %s133 = sphi 0, %s117
      %s141 = sphi 0, %s143
      %s144 = sphi 0, %s141
      %s145 = sphi 0, %s144
      %s161 = sphi 0, %s145
    $region4: #{tpu_custom_call.1} parent=1 // loop_header_branch
      %21 = sbr.rel (%p19) target = $region8
    $region5: #{tpu_custom_call.1} parent=1 // loop_body
      %s23 = ssub.s32 %s18, 1
      %s24 = ssub.s32 %s18, 2
      %s34 = sadd.s32 1, %s27
      %p35 = scmp.ge.s32.totalorder %s34, 1
      %s36 = scalar_select %p35, 0, %s34
      %s37 = sadd.s32 1, %s26
      %s38 = scalar_select %p35, %s37, %s26
      %p39 = scmp.ge.s32.totalorder %s38, 1
      %s40 = scalar_select %p39, 0, %s38
      %s41 = sadd.s32 1, %s25
      %s42 = scalar_select %p39, %s41, %s25
      %p43 = scmp.ge.s32.totalorder %s42, 2
      %s44 = scalar_select %p43, 0, %s42
      %s45 = ssub.s32 %s25, %s44
      %s46 = ssub.s32 %s26, %s40
      %s47 = sor.u32 %s45, %s46
      %p48 = scmp.eq.s32.totalorder %s47, 0
      %s50 = sadd.s32 %s49, 1
      %s51 = scalar_select %p48, %s49, %s50
      %p54 = pneg %p48
      %p55 = scmp.eq.s32.totalorder %s18, 1
      %p56 = por %p54, %p55
      %p57 = scmp.ne.s32.totalorder %s49, %s52
      %p58 = scmp.eq.s32.totalorder %s18, 0
      %p59 = por %p57, %p58
      %p60 = scmp.ne.s32.totalorder %s49, %s52
      %p61 = scmp.eq.s32.totalorder %s23, 1
      %p62 = por %p60, %p61
      %p63 = scmp.ne.s32.totalorder %s52, %s53
      %p64 = scmp.eq.s32.totalorder %s23, 0
      %p65 = por %p63, %p64
      %p66 = scmp.ne.s32.totalorder %s52, %s53
      %p67 = scmp.eq.s32.totalorder %s24, 1
      %p68 = por %p66, %p67
      %p70 = scmp.ne.s32.totalorder %s53, %s69
      %p71 = scmp.eq.s32.totalorder %s24, 0
      %p72 = por %p70, %p71
      %p73 = scmp.lt.s32.totalorder %s27, %s26
      %s74 = scalar_select %p73, %s27, %s26
      %p75 = scmp.lt.s32.totalorder %s36, %s40
      %s76 = scalar_select %p75, %s36, %s40
      %s77 = ssub.s32 %s25, %s44
      %s78 = ssub.s32 %s74, %s76
      %s79 = sor.u32 %s77, %s78
      %p80 = scmp.eq.s32.totalorder %s79, 0
      %s82 = sadd.s32 %s81, 1
      %s83 = scalar_select %p80, %s81, %s82
      %p86 = pneg %p80
      %p87 = scmp.eq.s32.totalorder %s18, 1
      %p88 = por %p86, %p87
      %p89 = scmp.ne.s32.totalorder %s81, %s84
      %p90 = scmp.eq.s32.totalorder %s18, 0
      %p91 = por %p89, %p90
      %p92 = scmp.ne.s32.totalorder %s81, %s84
      %p93 = scmp.eq.s32.totalorder %s23, 1
      %p94 = por %p92, %p93
      %p95 = scmp.ne.s32.totalorder %s84, %s85
      %p96 = scmp.eq.s32.totalorder %s23, 0
      %p97 = por %p95, %p96
      %p98 = scmp.ne.s32.totalorder %s84, %s85
      %p99 = scmp.eq.s32.totalorder %s24, 1
      %p100 = por %p98, %p99
      %p102 = scmp.ne.s32.totalorder %s85, %s101
      %p103 = scmp.eq.s32.totalorder %s24, 0
      %p104 = por %p102, %p103
      %p105 = scmp.lt.s32.totalorder %s27, %s26
      %s106 = scalar_select %p105, %s27, %s26
      %p107 = scmp.lt.s32.totalorder %s36, %s40
      %s108 = scalar_select %p107, %s36, %s40
      %s109 = ssub.s32 %s25, %s44
      %s110 = ssub.s32 %s106, %s108
      %s111 = sor.u32 %s109, %s110
      %p112 = scmp.eq.s32.totalorder %s111, 0
      %s114 = sadd.s32 %s113, 1
      %s115 = scalar_select %p112, %s113, %s114
      %p118 = pneg %p112
      %p119 = scmp.eq.s32.totalorder %s18, 1
      %p120 = por %p118, %p119
      %p121 = scmp.ne.s32.totalorder %s113, %s116
      %p122 = scmp.eq.s32.totalorder %s18, 0
      %p123 = por %p121, %p122
      %p124 = scmp.ne.s32.totalorder %s113, %s116
      %p125 = scmp.eq.s32.totalorder %s23, 1
      %p126 = por %p124, %p125
      %p127 = scmp.ne.s32.totalorder %s116, %s117
      %p128 = scmp.eq.s32.totalorder %s23, 0
      %p129 = por %p127, %p128
      %p130 = scmp.ne.s32.totalorder %s116, %s117
      %p131 = scmp.eq.s32.totalorder %s24, 1
      %p132 = por %p130, %p131
      %p134 = scmp.ne.s32.totalorder %s117, %s133
      %p135 = scmp.eq.s32.totalorder %s24, 0
      %p136 = por %p134, %p135
      %s137 = ssub.s32 %s25, %s44
      %s138 = ssub.s32 %s26, %s40
      %s139 = sor.u32 %s137, %s138
      %p140 = scmp.eq.s32.totalorder %s139, 0
      %s142 = sadd.s32 %s141, 1
      %s143 = scalar_select %p140, %s141, %s142
      %p146 = pneg %p140
      %p147 = scmp.eq.s32.totalorder %s18, 1
      %p148 = por %p146, %p147
      %p149 = scmp.ne.s32.totalorder %s141, %s144
      %p150 = scmp.eq.s32.totalorder %s18, 0
      %p151 = por %p149, %p150
      %p152 = scmp.ne.s32.totalorder %s141, %s144
      %p153 = scmp.eq.s32.totalorder %s23, 1
      %p154 = por %p152, %p153
      %p155 = scmp.ne.s32.totalorder %s144, %s145
      %p156 = scmp.eq.s32.totalorder %s23, 0
      %p157 = por %p155, %p156
      %p158 = scmp.ne.s32.totalorder %s144, %s145
      %p159 = scmp.eq.s32.totalorder %s24, 1
      %p160 = por %p158, %p159
      %p162 = scmp.ne.s32.totalorder %s145, %s161
      %p163 = scmp.eq.s32.totalorder %s24, 0
      %p164 = por %p162, %p163
      %p165 = scmp.le.s32.totalorder 1, %s18
      %p166 = scmp.lt.s32.totalorder %s18, 3
      %p167 = pnand %p165, %p166
      %p168 = pneg %p167
      // Predicated region
      $region9: #{tpu_custom_call.1} parent=5 // pred_check
        _
      $region10: #{tpu_custom_call.1} parent=5 // pred_check_branch
        %170 = sbr.rel (%p167) target = $region12
      $region11: #{tpu_custom_call.1} parent=5 // pred_region
        %s171 = ssub.s32 %s18, 1
      $region12: #{tpu_custom_call.1} parent=5 // pred_fallthru
        _
      %p172 = scmp.lt.s32.totalorder %s18, 2
      // Predicated region
      $region13: #{tpu_custom_call.1} parent=5 // pred_check
        %p173 = pneg %p172
      $region14: #{tpu_custom_call.1} parent=5 // pred_check_branch
        %175 = sbr.rel (%p173) target = $region16
      $region15: #{tpu_custom_call.1} parent=5 // pred_region
        // Predicated region
        $region17: #{tpu_custom_call.1} parent=15 // pred_check
          %p176 = pneg %p59
        $region18: #{tpu_custom_call.1} parent=15 // pred_check_branch
          %178 = sbr.rel (%p176) target = $region20
        $region19: #{tpu_custom_call.1} parent=15 // pred_region
          %s179 = sand.u32 %s49, 1
          %s180 = scalar_lea.sflag [#allocation6], %s179
          %s181 = sand.u32 %s49, 1
          %s182 = smul.addr %s181, 8
          %s183 = scalar_lea.vmem [#allocation5], %s182
          %s184 = smul.u32 2, %s26
          %186 = vsyncadd %s180, 0
          %s187 = smul.addr %s25, 2
          %s188 = sadd.s32 %s184, %s187
          %s189 = smul.addr %s188, 4
          %s190 = scalar_lea.hbm %s0, %s189
          %s191 = sshll.u32 %s190, 4
          %s192 = int_to_ptr.hbm [resolvable:$true] %s191
          %s193 = sshll.u32 %s183, 4
          %s194 = int_to_ptr.vmem [resolvable:$true] %s193
          %199 = dma.hbm_to_vmem [thread:$0]  %s192, 128, %s194, %s180, 64, 64, 4
        $region20: #{tpu_custom_call.1} parent=15 // pred_fallthru
          _
        // Predicated region
        $region21: #{tpu_custom_call.1} parent=15 // pred_check
          %p200 = pneg %p91
        $region22: #{tpu_custom_call.1} parent=15 // pred_check_branch
          %202 = sbr.rel (%p200) target = $region24
        $region23: #{tpu_custom_call.1} parent=15 // pred_region
          %s203 = sand.u32 %s18, 1
          %s204 = scalar_lea.sflag [#allocation9], %s203
          %s205 = sand.u32 %s81, 1
          %s206 = smul.addr %s205, 8
          %s207 = scalar_lea.vmem [#allocation8], %s206
          %p208 = scmp.lt.s32.totalorder %s27, %s26
          %s209 = scalar_select %p208, %s27, %s26
          %s210 = smul.u32 2, %s209
          %212 = vsyncadd %s204, 0
          %s213 = smul.addr %s25, 2
          %s214 = sadd.s32 %s210, %s213
          %s215 = smul.addr %s214, 4
          %s216 = scalar_lea.hbm %s1, %s215
          %s217 = sshll.u32 %s216, 4
          %s218 = int_to_ptr.hbm [resolvable:$true] %s217
          %s219 = sshll.u32 %s207, 4
          %s220 = int_to_ptr.vmem [resolvable:$true] %s219
          %225 = dma.hbm_to_vmem [thread:$0]  %s218, 128, %s220, %s204, 64, 64, 4
        $region24: #{tpu_custom_call.1} parent=15 // pred_fallthru
          _
        // Predicated region
        $region25: #{tpu_custom_call.1} parent=15 // pred_check
          %p226 = pneg %p123
        $region26: #{tpu_custom_call.1} parent=15 // pred_check_branch
          %228 = sbr.rel (%p226) target = $region28
        $region27: #{tpu_custom_call.1} parent=15 // pred_region
          %s229 = sand.u32 %s18, 1
          %s230 = scalar_lea.sflag [#allocation9], %s229
          %s231 = sand.u32 %s113, 1
          %s232 = smul.addr %s231, 8
          %s233 = scalar_lea.vmem [#allocation10], %s232
          %p234 = scmp.lt.s32.totalorder %s27, %s26
          %s235 = scalar_select %p234, %s27, %s26
          %s236 = smul.u32 2, %s235
          %238 = vsyncadd %s230, 0
          %s239 = smul.addr %s25, 2
          %s240 = sadd.s32 %s236, %s239
          %s241 = smul.addr %s240, 4
          %s242 = scalar_lea.hbm %s2, %s241
          %s243 = sshll.u32 %s242, 4
          %s244 = int_to_ptr.hbm [resolvable:$true] %s243
          %s245 = sshll.u32 %s233, 4
          %s246 = int_to_ptr.vmem [resolvable:$true] %s245
          %251 = dma.hbm_to_vmem [thread:$0]  %s244, 128, %s246, %s230, 64, 64, 4
        $region28: #{tpu_custom_call.1} parent=15 // pred_fallthru
          _
      $region16: #{tpu_custom_call.1} parent=5 // pred_fallthru
        _
      %p252 = scmp.le.s32.totalorder 1, %s18
      %p253 = scmp.lt.s32.totalorder %s18, 3
      %p254 = pnand %p252, %p253
      %p255 = pneg %p254
      // Predicated region
      $region29: #{tpu_custom_call.1} parent=5 // pred_check
        _
      $region30: #{tpu_custom_call.1} parent=5 // pred_check_branch
        %257 = sbr.rel (%p254) target = $region32
      $region31: #{tpu_custom_call.1} parent=5 // pred_region
        %s258 = ssub.s32 %s18, 1
        %s259 = sand.u32 %s52, 1
        %s260 = scalar_lea.sflag [#allocation6], %s259
        %s261 = sand.u32 %s52, 1
        %s262 = smul.addr %s261, 8
        %s263 = scalar_lea.vmem [#allocation5], %s262
        // Predicated region
        $region33: #{tpu_custom_call.1} parent=31 // pred_check
          %p264 = pneg %p65
        $region34: #{tpu_custom_call.1} parent=31 // pred_check_branch
          %266 = sbr.rel (%p264) target = $region36
        $region35: #{tpu_custom_call.1} parent=31 // pred_region
          %268 = dma.done %s260, 128
        $region36: #{tpu_custom_call.1} parent=31 // pred_fallthru
          _
        %s269 = sand.u32 %s23, 1
        %s270 = scalar_lea.sflag [#allocation9], %s269
        %s271 = sand.u32 %s84, 1
        %s272 = smul.addr %s271, 8
        %s273 = scalar_lea.vmem [#allocation8], %s272
        // Predicated region
        $region37: #{tpu_custom_call.1} parent=31 // pred_check
          %p274 = pneg %p97
        $region38: #{tpu_custom_call.1} parent=31 // pred_check_branch
          %276 = sbr.rel (%p274) target = $region40
        $region39: #{tpu_custom_call.1} parent=31 // pred_region
          %278 = dma.done %s270, 128
        $region40: #{tpu_custom_call.1} parent=31 // pred_fallthru
          _
        %s279 = sand.u32 %s23, 1
        %s280 = scalar_lea.sflag [#allocation9], %s279
        %s281 = sand.u32 %s116, 1
        %s282 = smul.addr %s281, 8
        %s283 = scalar_lea.vmem [#allocation10], %s282
        // Predicated region
        $region41: #{tpu_custom_call.1} parent=31 // pred_check
          %p284 = pneg %p129
        $region42: #{tpu_custom_call.1} parent=31 // pred_check_branch
          %286 = sbr.rel (%p284) target = $region44
        $region43: #{tpu_custom_call.1} parent=31 // pred_region
          %288 = dma.done %s280, 128
        $region44: #{tpu_custom_call.1} parent=31 // pred_fallthru
          _
        %s289 = sand.u32 %s52, 1
        %s290 = scalar_lea.sflag [#allocation6], %s289
        %s291 = sand.u32 %s52, 1
        %s292 = smul.addr %s291, 8
        %s293 = scalar_lea.vmem [#allocation5], %s292
        %p294 = pneg %p65
        %p295 = pneg %p62
        %s296 = sand.u32 %s23, 1
        %s297 = scalar_lea.sflag [#allocation9], %s296
        %s298 = sand.u32 %s84, 1
        %s299 = smul.addr %s298, 8
        %s300 = scalar_lea.vmem [#allocation8], %s299
        %p301 = pneg %p97
        %p302 = pneg %p94
        %s303 = sand.u32 %s23, 1
        %s304 = scalar_lea.sflag [#allocation9], %s303
        %s305 = sand.u32 %s116, 1
        %s306 = smul.addr %s305, 8
        %s307 = scalar_lea.vmem [#allocation10], %s306
        %p308 = pneg %p129
        %p309 = pneg %p126
        %p310 = pneg %p157
        %p311 = pneg %p154
        %s312 = sand.u32 %s144, 1
        %s313 = scalar_lea.sflag [#allocation7], %s312
        %s314 = sand.u32 %s144, 1
        %s315 = smul.addr %s314, 8
        %s316 = scalar_lea.vmem [#allocation11], %s315
        %s317 = smul.u32 2, %s29
        %p318 = scmp.lt.s32.totalorder %s30, %s29
        %s319 = scalar_select %p318, %s30, %s29
        %s320 = smul.u32 2, %s319
        %p321 = scmp.lt.s32.totalorder %s30, %s29
        %s322 = scalar_select %p321, %s30, %s29
        %s323 = smul.u32 2, %s322
        %s324 = smul.u32 2, %s29
        %p326 = scmp.eq.s32.totalorder %s30, 0
        // Predicated region
        $region45: #{tpu_custom_call.1} parent=31 // pred_check
          %p327 = pneg %p326
        $region46: #{tpu_custom_call.1} parent=31 // pred_check_branch
          %329 = sbr.rel (%p327) target = $region48
        $region47: #{tpu_custom_call.1} parent=31 // pred_region
          %vm330 = vcmask 31744
          %331 = vst.msk [vmem:[#allocation2] sm:$0xff] %vm330, -1e+30
          %332 = vst.msk [vmem:[#allocation2 + $0x8] sm:$0xff] %vm330, -1e+30
          %333 = vst.msk [vmem:[#allocation3] sm:$0xff] %vm330, 0.0
          %334 = vst.msk [vmem:[#allocation3 + $0x8] sm:$0xff] %vm330, 0.0
          %vm335 = vcmask 261120
          %336 = vst.msk [vmem:[#allocation4] sm:$0xff] %vm335, 0.0
          %337 = vst.msk [vmem:[#allocation4 + $0x8] sm:$0xff] %vm335, 0.0
        $region48: #{tpu_custom_call.1} parent=31 // pred_fallthru
          _
        %s338 = sadd.s32 %s29, 1
        %p339 = scmp.lt.s32.totalorder %s30, %s29
        // Predicated region
        $region49: #{tpu_custom_call.1} parent=31 // pred_check
          %p340 = pneg %p339
        $region50: #{tpu_custom_call.1} parent=31 // pred_check_branch
          %342 = sbr.rel (%p340) target = $region52
        $region51: #{tpu_custom_call.1} parent=31 // pred_region
          %v343 = vld [vmem:[%s263] sm:$0xf]
          %v344 = vld [vmem:[%s263 + $0x4] sm:$0xf]
          %v345 = vld [vmem:[%s273] sm:$0xf]
          %v346 = vld [vmem:[%s273 + $0x4] sm:$0xf]
          %v347 = vld [vmem:[%s283] sm:$0xf]
          %v348 = vld [vmem:[%s283 + $0x4] sm:$0xf]
          %v349 = vld [vmem:[#allocation2] sm:$0xff]
          %v350 = vld [vmem:[#allocation2 + $0x8] sm:$0xff]
          %v351 = vld [vmem:[#allocation3] sm:$0xff]
          %v352 = vld [vmem:[#allocation3 + $0x8] sm:$0xff]
          %v355 = vunpack.c.l.b16 %v343
          %v356 = vunpack.c.l.b16 %v344
          %v357 = vpack.c.b16 %v356, %v355
          %v360 = vunpack.c.l.b16 %v345
          %v361 = vunpack.c.l.b16 %v346
          %v362 = vpack.c.b16 %v361, %v360
          %vm363 = vcmask 64512
          %v365 = vsel %vm363, %v357, 0
          %v368 = vsel %vm363, %v362, 0
          %370 = vmatpush.bf16.xpose.msra.mxu0 0
          %371 = vmatpush.bf16.xpose.msra.mxu0 0
          %372 = vmatpush.bf16.xpose.msra.mxu0 0
          %373 = vmatpush.bf16.xpose.msra.mxu0 0
          %374 = vmatpush.bf16.xpose.msra.mxu0 0
          %375 = vmatpush.bf16.xpose.msra.mxu0 0
          %376 = vmatpush.bf16.xpose.msra.mxu0 0
          %377 = vmatpush.bf16.xpose.msra.mxu0 %v368
          %378 = vmatmul.bf16.gmra.mxu0 %v365
          %v379 = vpop.f32.mrf.mxu0
          %v380 = vadd.f32 0.0, %v379
          %v381 = vpop.f32.mrf.mxu0
          %v382 = vadd.f32 0.0, %v381
          %383 = vdwg.mxu0
          %vm384 = vcmask 130048
          %v385 = vsel %vm384, %v380, -inf
          %386 = vmax.xlane.f32.xlu0 %v385
          %v387 = vpop.xlane.xlu0 %386
          %v388 = vsel %vm384, %v382, -inf
          %389 = vmax.xlane.f32.xlu0 %v388
          %v390 = vpop.xlane.xlu0 %389
          %v391 = vmax.f32 %v349, %v387
          %v392 = vmax.f32 %v350, %v390
          %v393 = vsub.f32 %v349, %v391
          %v394 = vsub.f32 %v350, %v392
          %v395 = vmul.f32 %v393, 1.442695
          %v396 = vpow.pop %v395
          %v397 = vmul.f32 %v394, 1.442695
          %v398 = vpow.pop %v397
          %400 = vset.pattern.permute.xlu0 0
          %401 = vperm.xlu0 %400, %v391
          %v402 = vpop.permute.xlu0 %401
          %405 = vset.pattern.permute.xlu0 0
          %406 = vperm.xlu0 %405, %v392
          %v407 = vpop.permute.xlu0 %406
          %v409 = vsub.f32 %v380, %v402
          %v410 = vsub.f32 %v382, %v407
          %v411 = vmul.f32 %v409, 1.442695
          %v412 = vpow.pop %v411
          %v413 = vmul.f32 %v410, 1.442695
          %v414 = vpow.pop %v413
          %v415 = vmul.f32 %v396, %v351
          %v416 = vmul.f32 %v398, %v352
          %v417 = vsel %vm384, %v412, 0.0
          %418 = vadd.xlane.f32.xlu0 %v417
          %v419 = vpop.xlane.xlu0 %418
          %v420 = vsel %vm384, %v414, 0.0
          %421 = vadd.xlane.f32.xlu0 %v420
          %v422 = vpop.xlane.xlu0 %421
          %v423 = vadd.f32 %v415, %v419
          %v424 = vadd.f32 %v416, %v422
          %v425 = vpack.c.bf16 %v414, %v412
          %v428 = vunpack.c.l.b16 %v347
          %v429 = vunpack.c.l.b16 %v348
          %v430 = vpack.c.b16 %v429, %v428
          %v433 = vsel %vm384, %v425, 0
          %435 = vmatpush.bf16.msra.mxu0 0
          %436 = vmatpush.bf16.msra.mxu0 0
          %437 = vmatpush.bf16.msra.mxu0 0
          %438 = vmatpush.bf16.msra.mxu0 0
          %439 = vmatpush.bf16.msra.mxu0 0
          %440 = vmatpush.bf16.msra.mxu0 0
          %441 = vmatpush.bf16.msra.mxu0 0
          %442 = vmatpush.bf16.msra.mxu0 %v430
          %443 = vmatmul.bf16.gmra.mxu0 %v433
          %v444 = vpop.f32.mrf.mxu0
          %v445 = vadd.f32 0.0, %v444
          %v446 = vpop.f32.mrf.mxu0
          %v447 = vadd.f32 0.0, %v446
          %448 = vdwg.mxu0
          %450 = vset.pattern.permute.xlu0 0
          %451 = vperm.xlu0 %450, %v396
          %v452 = vpop.permute.xlu0 %451
          %455 = vset.pattern.permute.xlu0 0
          %456 = vperm.xlu0 %455, %v398
          %v457 = vpop.permute.xlu0 %456
          %459 = vrot.lane.b32.xlu0 %v357, 120
          %v460 = vpop.permute.xlu0 %459
          %461 = vrot.lane.b32.xlu0 %v362, 120
          %v462 = vpop.permute.xlu0 %461
          %v464 = vsel %vm363, %v460, 0
          %v467 = vsel %vm363, %v462, 0
          %469 = vmatpush.bf16.xpose.msra.mxu0 0
          %470 = vmatpush.bf16.xpose.msra.mxu0 0
          %471 = vmatpush.bf16.xpose.msra.mxu0 0
          %472 = vmatpush.bf16.xpose.msra.mxu0 0
          %473 = vmatpush.bf16.xpose.msra.mxu0 0
          %474 = vmatpush.bf16.xpose.msra.mxu0 0
          %475 = vmatpush.bf16.xpose.msra.mxu0 0
          %476 = vmatpush.bf16.xpose.msra.mxu0 %v467
          %477 = vmatmul.bf16.gmra.mxu0 %v464
          %v478 = vpop.f32.mrf.mxu0
          %v479 = vadd.f32 0.0, %v478
          %v480 = vpop.f32.mrf.mxu0
          %v481 = vadd.f32 0.0, %v480
          %482 = vdwg.mxu0
          %v483 = vsel %vm384, %v479, -inf
          %484 = vmax.xlane.f32.xlu0 %v483
          %v485 = vpop.xlane.xlu0 %484
          %v486 = vsel %vm384, %v481, -inf
          %487 = vmax.xlane.f32.xlu0 %v486
          %v488 = vpop.xlane.xlu0 %487
          %v489 = vmax.f32 %v349, %v485
          %v490 = vmax.f32 %v350, %v488
          %v491 = vsub.f32 %v349, %v489
          %v492 = vsub.f32 %v350, %v490
          %v493 = vmul.f32 %v491, 1.442695
          %v494 = vpow.pop %v493
          %v495 = vmul.f32 %v492, 1.442695
          %v496 = vpow.pop %v495
          %498 = vset.pattern.permute.xlu0 1
          %499 = vperm.xlu0 %498, %v489
          %v500 = vpop.permute.xlu0 %499
          %503 = vset.pattern.permute.xlu0 1
          %504 = vperm.xlu0 %503, %v490
          %v505 = vpop.permute.xlu0 %504
          %v507 = vsub.f32 %v479, %v500
          %v508 = vsub.f32 %v481, %v505
          %v509 = vmul.f32 %v507, 1.442695
          %v510 = vpow.pop %v509
          %v511 = vmul.f32 %v508, 1.442695
          %v512 = vpow.pop %v511
          %v513 = vmul.f32 %v494, %v351
          %v514 = vmul.f32 %v496, %v352
          %v515 = vsel %vm384, %v510, 0.0
          %516 = vadd.xlane.f32.xlu0 %v515
          %v517 = vpop.xlane.xlu0 %516
          %v518 = vsel %vm384, %v512, 0.0
          %519 = vadd.xlane.f32.xlu0 %v518
          %v520 = vpop.xlane.xlu0 %519
          %v521 = vadd.f32 %v513, %v517
          %v522 = vadd.f32 %v514, %v520
          %v523 = vpack.c.bf16 %v512, %v510
          %524 = vrot.lane.b32.xlu0 %v430, 120
          %v525 = vpop.permute.xlu0 %524
          %v528 = vsel %vm384, %v523, 0
          %530 = vmatpush.bf16.msra.mxu0 0
          %531 = vmatpush.bf16.msra.mxu0 0
          %532 = vmatpush.bf16.msra.mxu0 0
          %533 = vmatpush.bf16.msra.mxu0 0
          %534 = vmatpush.bf16.msra.mxu0 0
          %535 = vmatpush.bf16.msra.mxu0 0
          %536 = vmatpush.bf16.msra.mxu0 0
          %537 = vmatpush.bf16.msra.mxu0 %v525
          %538 = vmatmul.bf16.gmra.mxu0 %v528
          %v539 = vpop.f32.mrf.mxu0
          %v540 = vadd.f32 0.0, %v539
          %v541 = vpop.f32.mrf.mxu0
          %v542 = vadd.f32 0.0, %v541
          %543 = vdwg.mxu0
          %545 = vset.pattern.permute.xlu0 1
          %546 = vperm.xlu0 %545, %v494
          %v547 = vpop.permute.xlu0 %546
          %550 = vset.pattern.permute.xlu0 1
          %551 = vperm.xlu0 %550, %v496
          %v552 = vpop.permute.xlu0 %551
          %554 = vrot.lane.b32.xlu0 %v357, 112
          %v555 = vpop.permute.xlu0 %554
          %556 = vrot.lane.b32.xlu0 %v362, 112
          %v557 = vpop.permute.xlu0 %556
          %v559 = vsel %vm363, %v555, 0
          %v562 = vsel %vm363, %v557, 0
          %564 = vmatpush.bf16.xpose.msra.mxu0 0
          %565 = vmatpush.bf16.xpose.msra.mxu0 0
          %566 = vmatpush.bf16.xpose.msra.mxu0 0
          %567 = vmatpush.bf16.xpose.msra.mxu0 0
          %568 = vmatpush.bf16.xpose.msra.mxu0 0
          %569 = vmatpush.bf16.xpose.msra.mxu0 0
          %570 = vmatpush.bf16.xpose.msra.mxu0 0
          %571 = vmatpush.bf16.xpose.msra.mxu0 %v562
          %572 = vmatmul.bf16.gmra.mxu0 %v559
          %v573 = vpop.f32.mrf.mxu0
          %v574 = vadd.f32 0.0, %v573
          %v575 = vpop.f32.mrf.mxu0
          %v576 = vadd.f32 0.0, %v575
          %577 = vdwg.mxu0
          %v578 = vsel %vm384, %v574, -inf
          %579 = vmax.xlane.f32.xlu0 %v578
          %v580 = vpop.xlane.xlu0 %579
          %v581 = vsel %vm384, %v576, -inf
          %582 = vmax.xlane.f32.xlu0 %v581
          %v583 = vpop.xlane.xlu0 %582
          %v584 = vmax.f32 %v349, %v580
          %v585 = vmax.f32 %v350, %v583
          %v586 = vsub.f32 %v349, %v584
          %v587 = vsub.f32 %v350, %v585
          %v588 = vmul.f32 %v586, 1.442695
          %v589 = vpow.pop %v588
          %v590 = vmul.f32 %v587, 1.442695
          %v591 = vpow.pop %v590
          %593 = vset.pattern.permute.xlu0 2
          %594 = vperm.xlu0 %593, %v584
          %v595 = vpop.permute.xlu0 %594
          %598 = vset.pattern.permute.xlu0 2
          %599 = vperm.xlu0 %598, %v585
          %v600 = vpop.permute.xlu0 %599
          %v602 = vsub.f32 %v574, %v595
          %v603 = vsub.f32 %v576, %v600
          %v604 = vmul.f32 %v602, 1.442695
          %v605 = vpow.pop %v604
          %v606 = vmul.f32 %v603, 1.442695
          %v607 = vpow.pop %v606
          %v608 = vmul.f32 %v589, %v351
          %v609 = vmul.f32 %v591, %v352
          %v610 = vsel %vm384, %v605, 0.0
          %611 = vadd.xlane.f32.xlu0 %v610
          %v612 = vpop.xlane.xlu0 %611
          %v613 = vsel %vm384, %v607, 0.0
          %614 = vadd.xlane.f32.xlu0 %v613
          %v615 = vpop.xlane.xlu0 %614
          %v616 = vadd.f32 %v608, %v612
          %v617 = vadd.f32 %v609, %v615
          %v618 = vpack.c.bf16 %v607, %v605
          %619 = vrot.lane.b32.xlu0 %v430, 112
          %v620 = vpop.permute.xlu0 %619
          %v623 = vsel %vm384, %v618, 0
          %625 = vmatpush.bf16.msra.mxu0 0
          %626 = vmatpush.bf16.msra.mxu0 0
          %627 = vmatpush.bf16.msra.mxu0 0
          %628 = vmatpush.bf16.msra.mxu0 0
          %629 = vmatpush.bf16.msra.mxu0 0
          %630 = vmatpush.bf16.msra.mxu0 0
          %631 = vmatpush.bf16.msra.mxu0 0
          %632 = vmatpush.bf16.msra.mxu0 %v620
          %633 = vmatmul.bf16.gmra.mxu0 %v623
          %v634 = vpop.f32.mrf.mxu0
          %v635 = vadd.f32 0.0, %v634
          %v636 = vpop.f32.mrf.mxu0
          %v637 = vadd.f32 0.0, %v636
          %638 = vdwg.mxu0
          %640 = vset.pattern.permute.xlu0 2
          %641 = vperm.xlu0 %640, %v589
          %v642 = vpop.permute.xlu0 %641
          %645 = vset.pattern.permute.xlu0 2
          %646 = vperm.xlu0 %645, %v591
          %v647 = vpop.permute.xlu0 %646
          %649 = vrot.lane.b32.xlu0 %v357, 104
          %v650 = vpop.permute.xlu0 %649
          %651 = vrot.lane.b32.xlu0 %v362, 104
          %v652 = vpop.permute.xlu0 %651
          %v654 = vsel %vm363, %v650, 0
          %v657 = vsel %vm363, %v652, 0
          %659 = vmatpush.bf16.xpose.msra.mxu0 0
          %660 = vmatpush.bf16.xpose.msra.mxu0 0
          %661 = vmatpush.bf16.xpose.msra.mxu0 0
          %662 = vmatpush.bf16.xpose.msra.mxu0 0
          %663 = vmatpush.bf16.xpose.msra.mxu0 0
          %664 = vmatpush.bf16.xpose.msra.mxu0 0
          %665 = vmatpush.bf16.xpose.msra.mxu0 0
          %666 = vmatpush.bf16.xpose.msra.mxu0 %v657
          %667 = vmatmul.bf16.gmra.mxu0 %v654
          %v668 = vpop.f32.mrf.mxu0
          %v669 = vadd.f32 0.0, %v668
          %v670 = vpop.f32.mrf.mxu0
          %v671 = vadd.f32 0.0, %v670
          %672 = vdwg.mxu0
          %v673 = vsel %vm384, %v669, -inf
          %674 = vmax.xlane.f32.xlu0 %v673
          %v675 = vpop.xlane.xlu0 %674
          %v676 = vsel %vm384, %v671, -inf
          %677 = vmax.xlane.f32.xlu0 %v676
          %v678 = vpop.xlane.xlu0 %677
          %v679 = vmax.f32 %v349, %v675
          %v680 = vmax.f32 %v350, %v678
          %v681 = vsub.f32 %v349, %v679
          %v682 = vsub.f32 %v350, %v680
          %v683 = vmul.f32 %v681, 1.442695
          %v684 = vpow.pop %v683
          %v685 = vmul.f32 %v682, 1.442695
          %v686 = vpow.pop %v685
          %688 = vset.pattern.permute.xlu0 3
          %689 = vperm.xlu0 %688, %v679
          %v690 = vpop.permute.xlu0 %689
          %693 = vset.pattern.permute.xlu0 3
          %694 = vperm.xlu0 %693, %v680
          %v695 = vpop.permute.xlu0 %694
          %v697 = vsub.f32 %v669, %v690
          %v698 = vsub.f32 %v671, %v695
          %v699 = vmul.f32 %v697, 1.442695
          %v700 = vpow.pop %v699
          %v701 = vmul.f32 %v698, 1.442695
          %v702 = vpow.pop %v701
          %v703 = vmul.f32 %v684, %v351
          %v704 = vmul.f32 %v686, %v352
          %v705 = vsel %vm384, %v700, 0.0
          %706 = vadd.xlane.f32.xlu0 %v705
          %v707 = vpop.xlane.xlu0 %706
          %v708 = vsel %vm384, %v702, 0.0
          %709 = vadd.xlane.f32.xlu0 %v708
          %v710 = vpop.xlane.xlu0 %709
          %v711 = vadd.f32 %v703, %v707
          %v712 = vadd.f32 %v704, %v710
          %v713 = vpack.c.bf16 %v702, %v700
          %714 = vrot.lane.b32.xlu0 %v430, 104
          %v715 = vpop.permute.xlu0 %714
          %v718 = vsel %vm384, %v713, 0
          %720 = vmatpush.bf16.msra.mxu0 0
          %721 = vmatpush.bf16.msra.mxu0 0
          %722 = vmatpush.bf16.msra.mxu0 0
          %723 = vmatpush.bf16.msra.mxu0 0
          %724 = vmatpush.bf16.msra.mxu0 0
          %725 = vmatpush.bf16.msra.mxu0 0
          %726 = vmatpush.bf16.msra.mxu0 0
          %727 = vmatpush.bf16.msra.mxu0 %v715
          %728 = vmatmul.bf16.gmra.mxu0 %v718
          %v729 = vpop.f32.mrf.mxu0
          %v730 = vadd.f32 0.0, %v729
          %v731 = vpop.f32.mrf.mxu0
          %v732 = vadd.f32 0.0, %v731
          %733 = vdwg.mxu0
          %735 = vset.pattern.permute.xlu0 3
          %736 = vperm.xlu0 %735, %v684
          %v737 = vpop.permute.xlu0 %736
          %740 = vset.pattern.permute.xlu0 3
          %741 = vperm.xlu0 %740, %v686
          %v742 = vpop.permute.xlu0 %741
          %vm744 = vcmask 7168
          %v745 = vsel %vm744, %v391, %v489
          %v746 = vsel %vm744, %v392, %v490
          %vm747 = vcmask 15360
          %v748 = vsel %vm747, %v745, %v584
          %v749 = vsel %vm747, %v746, %v585
          %vm750 = vcmask 23552
          %v751 = vsel %vm750, %v748, %v679
          %v752 = vsel %vm750, %v749, %v680
          %vm753 = vcmask 31744
          %754 = vst.msk [vmem:[#allocation2] sm:$0xff] %vm753, %v751
          %755 = vst.msk [vmem:[#allocation2 + $0x8] sm:$0xff] %vm753, %v752
          %v756 = vsel %vm744, %v423, %v521
          %v757 = vsel %vm744, %v424, %v522
          %v758 = vsel %vm747, %v756, %v616
          %v759 = vsel %vm747, %v757, %v617
          %v760 = vsel %vm750, %v758, %v711
          %v761 = vsel %vm750, %v759, %v712
          %762 = vst.msk [vmem:[#allocation3] sm:$0xff] %vm753, %v760
          %763 = vst.msk [vmem:[#allocation3 + $0x8] sm:$0xff] %vm753, %v761
          %v764 = vsel %vm363, %v452, %v547
          %v765 = vsel %vm363, %v457, %v552
          %v766 = vsel %vm384, %v764, %v642
          %v767 = vsel %vm384, %v765, %v647
          %vm768 = vcmask 195584
          %v769 = vsel %vm768, %v766, %v737
          %v770 = vsel %vm768, %v767, %v742
          %v771 = vld [vmem:[#allocation4] sm:$0xff]
          %v772 = vld [vmem:[#allocation4 + $0x8] sm:$0xff]
          %v773 = vmul.f32 %v769, %v771
          %v774 = vmul.f32 %v770, %v772
          %777 = vrot.lane.b32.xlu0 %v540, 8
          %v778 = vpop.permute.xlu0 %777
          %779 = vrot.lane.b32.xlu0 %v542, 8
          %v780 = vpop.permute.xlu0 %779
          %785 = vrot.lane.b32.xlu0 %v635, 16
          %v786 = vpop.permute.xlu0 %785
          %787 = vrot.lane.b32.xlu0 %v637, 16
          %v788 = vpop.permute.xlu0 %787
          %793 = vrot.lane.b32.xlu0 %v730, 24
          %v794 = vpop.permute.xlu0 %793
          %795 = vrot.lane.b32.xlu0 %v732, 24
          %v796 = vpop.permute.xlu0 %795
          %v799 = vsel %vm363, %v445, %v778
          %v800 = vsel %vm363, %v447, %v780
          %v801 = vsel %vm384, %v799, %v786
          %v802 = vsel %vm384, %v800, %v788
          %v803 = vsel %vm768, %v801, %v794
          %v804 = vsel %vm768, %v802, %v796
          %v805 = vadd.f32 %v773, %v803
          %v806 = vadd.f32 %v774, %v804
          %vm807 = vcmask 261120
          %808 = vst.msk [vmem:[#allocation4] sm:$0xff] %vm807, %v805
          %809 = vst.msk [vmem:[#allocation4 + $0x8] sm:$0xff] %vm807, %v806
        $region52: #{tpu_custom_call.1} parent=31 // pred_fallthru
          _
        %p810 = scmp.ge.s32.totalorder %s30, %s29
        %p811 = scmp.lt.s32.totalorder %s30, %s338
        %p812 = pnand %p810, %p811
        %p813 = pneg %p812
        // Predicated region
        $region53: #{tpu_custom_call.1} parent=31 // pred_check
          _
        $region54: #{tpu_custom_call.1} parent=31 // pred_check_branch
          %815 = sbr.rel (%p812) target = $region56
        $region55: #{tpu_custom_call.1} parent=31 // pred_region
          %v816 = vld [vmem:[%s263] sm:$0xf]
          %v817 = vld [vmem:[%s263 + $0x4] sm:$0xf]
          %v818 = vld [vmem:[%s273] sm:$0xf]
          %v819 = vld [vmem:[%s273 + $0x4] sm:$0xf]
          %v820 = vld [vmem:[%s283] sm:$0xf]
          %v821 = vld [vmem:[%s283 + $0x4] sm:$0xf]
          %v822 = vld [vmem:[#allocation2] sm:$0xff]
          %v823 = vld [vmem:[#allocation2 + $0x8] sm:$0xff]
          %v824 = vld [vmem:[#allocation3] sm:$0xff]
          %v825 = vld [vmem:[#allocation3 + $0x8] sm:$0xff]
          %v826 = vlaneseq
          %v827 = vshrl.u32 %v826, 7
          %v828 = vadd.s32 %v827, 8
          %s829 = smul.u32 %s29, 16
          %v830 = vstv %s829
          %v831 = vadd.s32 %v827, %v830
          %v832 = vadd.s32 %v828, %v830
          %v833 = vlaneseq
          %v834 = vand.u32 %v833, 127
          %s835 = smul.u32 %s30, 16
          %v836 = vstv %s835
          %v837 = vadd.s32 %v834, %v836
          %vm838 = vcmp.ge.s32.totalorder %v831, %v837
          %vm839 = vcmp.ge.s32.totalorder %v832, %v837
          %v842 = vunpack.c.l.b16 %v816
          %v843 = vunpack.c.l.b16 %v817
          %v844 = vpack.c.b16 %v843, %v842
          %v847 = vunpack.c.l.b16 %v818
          %v848 = vunpack.c.l.b16 %v819
          %v849 = vpack.c.b16 %v848, %v847
          %vm850 = vcmask 64512
          %v852 = vsel %vm850, %v844, 0
          %v855 = vsel %vm850, %v849, 0
          %857 = vmatpush.bf16.xpose.msra.mxu0 0
          %858 = vmatpush.bf16.xpose.msra.mxu0 0
          %859 = vmatpush.bf16.xpose.msra.mxu0 0
          %860 = vmatpush.bf16.xpose.msra.mxu0 0
          %861 = vmatpush.bf16.xpose.msra.mxu0 0
          %862 = vmatpush.bf16.xpose.msra.mxu0 0
          %863 = vmatpush.bf16.xpose.msra.mxu0 0
          %864 = vmatpush.bf16.xpose.msra.mxu0 %v855
          %865 = vmatmul.bf16.gmra.mxu0 %v852
          %v866 = vpop.f32.mrf.mxu0
          %v867 = vadd.f32 0.0, %v866
          %v868 = vpop.f32.mrf.mxu0
          %v869 = vadd.f32 0.0, %v868
          %870 = vdwg.mxu0
          %v871 = vsel %vm838, %v867, -1e+30
          %v872 = vsel %vm839, %v869, -1e+30
          %vm873 = vcmask 130048
          %v874 = vsel %vm873, %v871, -inf
          %875 = vmax.xlane.f32.xlu0 %v874
          %v876 = vpop.xlane.xlu0 %875
          %v877 = vsel %vm873, %v872, -inf
          %878 = vmax.xlane.f32.xlu0 %v877
          %v879 = vpop.xlane.xlu0 %878
          %v880 = vmax.f32 %v822, %v876
          %v881 = vmax.f32 %v823, %v879
          %v882 = vsub.f32 %v822, %v880
          %v883 = vsub.f32 %v823, %v881
          %v884 = vmul.f32 %v882, 1.442695
          %v885 = vpow.pop %v884
          %v886 = vmul.f32 %v883, 1.442695
          %v887 = vpow.pop %v886
          %889 = vset.pattern.permute.xlu0 0
          %890 = vperm.xlu0 %889, %v880
          %v891 = vpop.permute.xlu0 %890
          %894 = vset.pattern.permute.xlu0 0
          %895 = vperm.xlu0 %894, %v881
          %v896 = vpop.permute.xlu0 %895
          %v898 = vsub.f32 %v871, %v891
          %v899 = vsub.f32 %v872, %v896
          %v900 = vmul.f32 %v898, 1.442695
          %v901 = vpow.pop %v900
          %v902 = vmul.f32 %v899, 1.442695
          %v903 = vpow.pop %v902
          %v904 = vmul.f32 %v885, %v824
          %v905 = vmul.f32 %v887, %v825
          %v906 = vsel %vm873, %v901, 0.0
          %907 = vadd.xlane.f32.xlu0 %v906
          %v908 = vpop.xlane.xlu0 %907
          %v909 = vsel %vm873, %v903, 0.0
          %910 = vadd.xlane.f32.xlu0 %v909
          %v911 = vpop.xlane.xlu0 %910
          %v912 = vadd.f32 %v904, %v908
          %v913 = vadd.f32 %v905, %v911
          %v914 = vpack.c.bf16 %v903, %v901
          %v917 = vunpack.c.l.b16 %v820
          %v918 = vunpack.c.l.b16 %v821
          %v919 = vpack.c.b16 %v918, %v917
          %v922 = vsel %vm873, %v914, 0
          %924 = vmatpush.bf16.msra.mxu0 0
          %925 = vmatpush.bf16.msra.mxu0 0
          %926 = vmatpush.bf16.msra.mxu0 0
          %927 = vmatpush.bf16.msra.mxu0 0
          %928 = vmatpush.bf16.msra.mxu0 0
          %929 = vmatpush.bf16.msra.mxu0 0
          %930 = vmatpush.bf16.msra.mxu0 0
          %931 = vmatpush.bf16.msra.mxu0 %v919
          %932 = vmatmul.bf16.gmra.mxu0 %v922
          %v933 = vpop.f32.mrf.mxu0
          %v934 = vadd.f32 0.0, %v933
          %v935 = vpop.f32.mrf.mxu0
          %v936 = vadd.f32 0.0, %v935
          %937 = vdwg.mxu0
          %939 = vset.pattern.permute.xlu0 0
          %940 = vperm.xlu0 %939, %v885
          %v941 = vpop.permute.xlu0 %940
          %944 = vset.pattern.permute.xlu0 0
          %945 = vperm.xlu0 %944, %v887
          %v946 = vpop.permute.xlu0 %945
          %948 = vrot.lane.b32.xlu0 %v844, 120
          %v949 = vpop.permute.xlu0 %948
          %950 = vrot.lane.b32.xlu0 %v849, 120
          %v951 = vpop.permute.xlu0 %950
          %v953 = vsel %vm850, %v949, 0
          %v956 = vsel %vm850, %v951, 0
          %958 = vmatpush.bf16.xpose.msra.mxu0 0
          %959 = vmatpush.bf16.xpose.msra.mxu0 0
          %960 = vmatpush.bf16.xpose.msra.mxu0 0
          %961 = vmatpush.bf16.xpose.msra.mxu0 0
          %962 = vmatpush.bf16.xpose.msra.mxu0 0
          %963 = vmatpush.bf16.xpose.msra.mxu0 0
          %964 = vmatpush.bf16.xpose.msra.mxu0 0
          %965 = vmatpush.bf16.xpose.msra.mxu0 %v956
          %966 = vmatmul.bf16.gmra.mxu0 %v953
          %v967 = vpop.f32.mrf.mxu0
          %v968 = vadd.f32 0.0, %v967
          %v969 = vpop.f32.mrf.mxu0
          %v970 = vadd.f32 0.0, %v969
          %971 = vdwg.mxu0
          %v972 = vsel %vm838, %v968, -1e+30
          %v973 = vsel %vm839, %v970, -1e+30
          %v974 = vsel %vm873, %v972, -inf
          %975 = vmax.xlane.f32.xlu0 %v974
          %v976 = vpop.xlane.xlu0 %975
          %v977 = vsel %vm873, %v973, -inf
          %978 = vmax.xlane.f32.xlu0 %v977
          %v979 = vpop.xlane.xlu0 %978
          %v980 = vmax.f32 %v822, %v976
          %v981 = vmax.f32 %v823, %v979
          %v982 = vsub.f32 %v822, %v980
          %v983 = vsub.f32 %v823, %v981
          %v984 = vmul.f32 %v982, 1.442695
          %v985 = vpow.pop %v984
          %v986 = vmul.f32 %v983, 1.442695
          %v987 = vpow.pop %v986
          %989 = vset.pattern.permute.xlu0 1
          %990 = vperm.xlu0 %989, %v980
          %v991 = vpop.permute.xlu0 %990
          %994 = vset.pattern.permute.xlu0 1
          %995 = vperm.xlu0 %994, %v981
          %v996 = vpop.permute.xlu0 %995
          %v998 = vsub.f32 %v972, %v991
          %v999 = vsub.f32 %v973, %v996
          %v1000 = vmul.f32 %v998, 1.442695
          %v1001 = vpow.pop %v1000
          %v1002 = vmul.f32 %v999, 1.442695
          %v1003 = vpow.pop %v1002
          %v1004 = vmul.f32 %v985, %v824
          %v1005 = vmul.f32 %v987, %v825
          %v1006 = vsel %vm873, %v1001, 0.0
          %1007 = vadd.xlane.f32.xlu0 %v1006
          %v1008 = vpop.xlane.xlu0 %1007
          %v1009 = vsel %vm873, %v1003, 0.0
          %1010 = vadd.xlane.f32.xlu0 %v1009
          %v1011 = vpop.xlane.xlu0 %1010
          %v1012 = vadd.f32 %v1004, %v1008
          %v1013 = vadd.f32 %v1005, %v1011
          %v1014 = vpack.c.bf16 %v1003, %v1001
          %1015 = vrot.lane.b32.xlu0 %v919, 120
          %v1016 = vpop.permute.xlu0 %1015
          %v1019 = vsel %vm873, %v1014, 0
          %1021 = vmatpush.bf16.msra.mxu0 0
          %1022 = vmatpush.bf16.msra.mxu0 0
          %1023 = vmatpush.bf16.msra.mxu0 0
          %1024 = vmatpush.bf16.msra.mxu0 0
          %1025 = vmatpush.bf16.msra.mxu0 0
          %1026 = vmatpush.bf16.msra.mxu0 0
          %1027 = vmatpush.bf16.msra.mxu0 0
          %1028 = vmatpush.bf16.msra.mxu0 %v1016
          %1029 = vmatmul.bf16.gmra.mxu0 %v1019
          %v1030 = vpop.f32.mrf.mxu0
          %v1031 = vadd.f32 0.0, %v1030
          %v1032 = vpop.f32.mrf.mxu0
          %v1033 = vadd.f32 0.0, %v1032
          %1034 = vdwg.mxu0
          %1036 = vset.pattern.permute.xlu0 1
          %1037 = vperm.xlu0 %1036, %v985
          %v1038 = vpop.permute.xlu0 %1037
          %1041 = vset.pattern.permute.xlu0 1
          %1042 = vperm.xlu0 %1041, %v987
          %v1043 = vpop.permute.xlu0 %1042
          %1045 = vrot.lane.b32.xlu0 %v844, 112
          %v1046 = vpop.permute.xlu0 %1045
          %1047 = vrot.lane.b32.xlu0 %v849, 112
          %v1048 = vpop.permute.xlu0 %1047
          %v1050 = vsel %vm850, %v1046, 0
          %v1053 = vsel %vm850, %v1048, 0
          %1055 = vmatpush.bf16.xpose.msra.mxu0 0
          %1056 = vmatpush.bf16.xpose.msra.mxu0 0
          %1057 = vmatpush.bf16.xpose.msra.mxu0 0
          %1058 = vmatpush.bf16.xpose.msra.mxu0 0
          %1059 = vmatpush.bf16.xpose.msra.mxu0 0
          %1060 = vmatpush.bf16.xpose.msra.mxu0 0
          %1061 = vmatpush.bf16.xpose.msra.mxu0 0
          %1062 = vmatpush.bf16.xpose.msra.mxu0 %v1053
          %1063 = vmatmul.bf16.gmra.mxu0 %v1050
          %v1064 = vpop.f32.mrf.mxu0
          %v1065 = vadd.f32 0.0, %v1064
          %v1066 = vpop.f32.mrf.mxu0
          %v1067 = vadd.f32 0.0, %v1066
          %1068 = vdwg.mxu0
          %v1069 = vsel %vm838, %v1065, -1e+30
          %v1070 = vsel %vm839, %v1067, -1e+30
          %v1071 = vsel %vm873, %v1069, -inf
          %1072 = vmax.xlane.f32.xlu0 %v1071
          %v1073 = vpop.xlane.xlu0 %1072
          %v1074 = vsel %vm873, %v1070, -inf
          %1075 = vmax.xlane.f32.xlu0 %v1074
          %v1076 = vpop.xlane.xlu0 %1075
          %v1077 = vmax.f32 %v822, %v1073
          %v1078 = vmax.f32 %v823, %v1076
          %v1079 = vsub.f32 %v822, %v1077
          %v1080 = vsub.f32 %v823, %v1078
          %v1081 = vmul.f32 %v1079, 1.442695
          %v1082 = vpow.pop %v1081
          %v1083 = vmul.f32 %v1080, 1.442695
          %v1084 = vpow.pop %v1083
          %1086 = vset.pattern.permute.xlu0 2
          %1087 = vperm.xlu0 %1086, %v1077
          %v1088 = vpop.permute.xlu0 %1087
          %1091 = vset.pattern.permute.xlu0 2
          %1092 = vperm.xlu0 %1091, %v1078
          %v1093 = vpop.permute.xlu0 %1092
          %v1095 = vsub.f32 %v1069, %v1088
          %v1096 = vsub.f32 %v1070, %v1093
          %v1097 = vmul.f32 %v1095, 1.442695
          %v1098 = vpow.pop %v1097
          %v1099 = vmul.f32 %v1096, 1.442695
          %v1100 = vpow.pop %v1099
          %v1101 = vmul.f32 %v1082, %v824
          %v1102 = vmul.f32 %v1084, %v825
          %v1103 = vsel %vm873, %v1098, 0.0
          %1104 = vadd.xlane.f32.xlu0 %v1103
          %v1105 = vpop.xlane.xlu0 %1104
          %v1106 = vsel %vm873, %v1100, 0.0
          %1107 = vadd.xlane.f32.xlu0 %v1106
          %v1108 = vpop.xlane.xlu0 %1107
          %v1109 = vadd.f32 %v1101, %v1105
          %v1110 = vadd.f32 %v1102, %v1108
          %v1111 = vpack.c.bf16 %v1100, %v1098
          %1112 = vrot.lane.b32.xlu0 %v919, 112
          %v1113 = vpop.permute.xlu0 %1112
          %v1116 = vsel %vm873, %v1111, 0
          %1118 = vmatpush.bf16.msra.mxu0 0
          %1119 = vmatpush.bf16.msra.mxu0 0
          %1120 = vmatpush.bf16.msra.mxu0 0
          %1121 = vmatpush.bf16.msra.mxu0 0
          %1122 = vmatpush.bf16.msra.mxu0 0
          %1123 = vmatpush.bf16.msra.mxu0 0
          %1124 = vmatpush.bf16.msra.mxu0 0
          %1125 = vmatpush.bf16.msra.mxu0 %v1113
          %1126 = vmatmul.bf16.gmra.mxu0 %v1116
          %v1127 = vpop.f32.mrf.mxu0
          %v1128 = vadd.f32 0.0, %v1127
          %v1129 = vpop.f32.mrf.mxu0
          %v1130 = vadd.f32 0.0, %v1129
          %1131 = vdwg.mxu0
          %1133 = vset.pattern.permute.xlu0 2
          %1134 = vperm.xlu0 %1133, %v1082
          %v1135 = vpop.permute.xlu0 %1134
          %1138 = vset.pattern.permute.xlu0 2
          %1139 = vperm.xlu0 %1138, %v1084
          %v1140 = vpop.permute.xlu0 %1139
          %1142 = vrot.lane.b32.xlu0 %v844, 104
          %v1143 = vpop.permute.xlu0 %1142
          %1144 = vrot.lane.b32.xlu0 %v849, 104
          %v1145 = vpop.permute.xlu0 %1144
          %v1147 = vsel %vm850, %v1143, 0
          %v1150 = vsel %vm850, %v1145, 0
          %1152 = vmatpush.bf16.xpose.msra.mxu0 0
          %1153 = vmatpush.bf16.xpose.msra.mxu0 0
          %1154 = vmatpush.bf16.xpose.msra.mxu0 0
          %1155 = vmatpush.bf16.xpose.msra.mxu0 0
          %1156 = vmatpush.bf16.xpose.msra.mxu0 0
          %1157 = vmatpush.bf16.xpose.msra.mxu0 0
          %1158 = vmatpush.bf16.xpose.msra.mxu0 0
          %1159 = vmatpush.bf16.xpose.msra.mxu0 %v1150
          %1160 = vmatmul.bf16.gmra.mxu0 %v1147
          %v1161 = vpop.f32.mrf.mxu0
          %v1162 = vadd.f32 0.0, %v1161
          %v1163 = vpop.f32.mrf.mxu0
          %v1164 = vadd.f32 0.0, %v1163
          %1165 = vdwg.mxu0
          %v1166 = vsel %vm838, %v1162, -1e+30
          %v1167 = vsel %vm839, %v1164, -1e+30
          %v1168 = vsel %vm873, %v1166, -inf
          %1169 = vmax.xlane.f32.xlu0 %v1168
          %v1170 = vpop.xlane.xlu0 %1169
          %v1171 = vsel %vm873, %v1167, -inf
          %1172 = vmax.xlane.f32.xlu0 %v1171
          %v1173 = vpop.xlane.xlu0 %1172
          %v1174 = vmax.f32 %v822, %v1170
          %v1175 = vmax.f32 %v823, %v1173
          %v1176 = vsub.f32 %v822, %v1174
          %v1177 = vsub.f32 %v823, %v1175
          %v1178 = vmul.f32 %v1176, 1.442695
          %v1179 = vpow.pop %v1178
          %v1180 = vmul.f32 %v1177, 1.442695
          %v1181 = vpow.pop %v1180
          %1183 = vset.pattern.permute.xlu0 3
          %1184 = vperm.xlu0 %1183, %v1174
          %v1185 = vpop.permute.xlu0 %1184
          %1188 = vset.pattern.permute.xlu0 3
          %1189 = vperm.xlu0 %1188, %v1175
          %v1190 = vpop.permute.xlu0 %1189
          %v1192 = vsub.f32 %v1166, %v1185
          %v1193 = vsub.f32 %v1167, %v1190
          %v1194 = vmul.f32 %v1192, 1.442695
          %v1195 = vpow.pop %v1194
          %v1196 = vmul.f32 %v1193, 1.442695
          %v1197 = vpow.pop %v1196
          %v1198 = vmul.f32 %v1179, %v824
          %v1199 = vmul.f32 %v1181, %v825
          %v1200 = vsel %vm873, %v1195, 0.0
          %1201 = vadd.xlane.f32.xlu0 %v1200
          %v1202 = vpop.xlane.xlu0 %1201
          %v1203 = vsel %vm873, %v1197, 0.0
          %1204 = vadd.xlane.f32.xlu0 %v1203
          %v1205 = vpop.xlane.xlu0 %1204
          %v1206 = vadd.f32 %v1198, %v1202
          %v1207 = vadd.f32 %v1199, %v1205
          %v1208 = vpack.c.bf16 %v1197, %v1195
          %1209 = vrot.lane.b32.xlu0 %v919, 104
          %v1210 = vpop.permute.xlu0 %1209
          %v1213 = vsel %vm873, %v1208, 0
          %1215 = vmatpush.bf16.msra.mxu0 0
          %1216 = vmatpush.bf16.msra.mxu0 0
          %1217 = vmatpush.bf16.msra.mxu0 0
          %1218 = vmatpush.bf16.msra.mxu0 0
          %1219 = vmatpush.bf16.msra.mxu0 0
          %1220 = vmatpush.bf16.msra.mxu0 0
          %1221 = vmatpush.bf16.msra.mxu0 0
          %1222 = vmatpush.bf16.msra.mxu0 %v1210
          %1223 = vmatmul.bf16.gmra.mxu0 %v1213
          %v1224 = vpop.f32.mrf.mxu0
          %v1225 = vadd.f32 0.0, %v1224
          %v1226 = vpop.f32.mrf.mxu0
          %v1227 = vadd.f32 0.0, %v1226
          %1228 = vdwg.mxu0
          %1230 = vset.pattern.permute.xlu0 3
          %1231 = vperm.xlu0 %1230, %v1179
          %v1232 = vpop.permute.xlu0 %1231
          %1235 = vset.pattern.permute.xlu0 3
          %1236 = vperm.xlu0 %1235, %v1181
          %v1237 = vpop.permute.xlu0 %1236
          %vm1239 = vcmask 7168
          %v1240 = vsel %vm1239, %v880, %v980
          %v1241 = vsel %vm1239, %v881, %v981
          %vm1242 = vcmask 15360
          %v1243 = vsel %vm1242, %v1240, %v1077
          %v1244 = vsel %vm1242, %v1241, %v1078
          %vm1245 = vcmask 23552
          %v1246 = vsel %vm1245, %v1243, %v1174
          %v1247 = vsel %vm1245, %v1244, %v1175
          %vm1248 = vcmask 31744
          %1249 = vst.msk [vmem:[#allocation2] sm:$0xff] %vm1248, %v1246
          %1250 = vst.msk [vmem:[#allocation2 + $0x8] sm:$0xff] %vm1248, %v1247
          %v1251 = vsel %vm1239, %v912, %v1012
          %v1252 = vsel %vm1239, %v913, %v1013
          %v1253 = vsel %vm1242, %v1251, %v1109
          %v1254 = vsel %vm1242, %v1252, %v1110
          %v1255 = vsel %vm1245, %v1253, %v1206
          %v1256 = vsel %vm1245, %v1254, %v1207
          %1257 = vst.msk [vmem:[#allocation3] sm:$0xff] %vm1248, %v1255
          %1258 = vst.msk [vmem:[#allocation3 + $0x8] sm:$0xff] %vm1248, %v1256
          %v1259 = vsel %vm850, %v941, %v1038
          %v1260 = vsel %vm850, %v946, %v1043
          %v1261 = vsel %vm873, %v1259, %v1135
          %v1262 = vsel %vm873, %v1260, %v1140
          %vm1263 = vcmask 195584
          %v1264 = vsel %vm1263, %v1261, %v1232
          %v1265 = vsel %vm1263, %v1262, %v1237
          %v1266 = vld [vmem:[#allocation4] sm:$0xff]
          %v1267 = vld [vmem:[#allocation4 + $0x8] sm:$0xff]
          %v1268 = vmul.f32 %v1264, %v1266
          %v1269 = vmul.f32 %v1265, %v1267
          %1272 = vrot.lane.b32.xlu0 %v1031, 8
          %v1273 = vpop.permute.xlu0 %1272
          %1274 = vrot.lane.b32.xlu0 %v1033, 8
          %v1275 = vpop.permute.xlu0 %1274
          %1280 = vrot.lane.b32.xlu0 %v1128, 16
          %v1281 = vpop.permute.xlu0 %1280
          %1282 = vrot.lane.b32.xlu0 %v1130, 16
          %v1283 = vpop.permute.xlu0 %1282
          %1288 = vrot.lane.b32.xlu0 %v1225, 24
          %v1289 = vpop.permute.xlu0 %1288
          %1290 = vrot.lane.b32.xlu0 %v1227, 24
          %v1291 = vpop.permute.xlu0 %1290
          %v1294 = vsel %vm850, %v934, %v1273
          %v1295 = vsel %vm850, %v936, %v1275
          %v1296 = vsel %vm873, %v1294, %v1281
          %v1297 = vsel %vm873, %v1295, %v1283
          %v1298 = vsel %vm1263, %v1296, %v1289
          %v1299 = vsel %vm1263, %v1297, %v1291
          %v1300 = vadd.f32 %v1268, %v1298
          %v1301 = vadd.f32 %v1269, %v1299
          %vm1302 = vcmask 261120
          %1303 = vst.msk [vmem:[#allocation4] sm:$0xff] %vm1302, %v1300
          %1304 = vst.msk [vmem:[#allocation4 + $0x8] sm:$0xff] %vm1302, %v1301
        $region56: #{tpu_custom_call.1} parent=31 // pred_fallthru
          _
        // Predicated region
        $region57: #{tpu_custom_call.1} parent=31 // pred_check
          %p1305 = pneg %p326
        $region58: #{tpu_custom_call.1} parent=31 // pred_check_branch
          %1307 = sbr.rel (%p1305) target = $region60
        $region59: #{tpu_custom_call.1} parent=31 // pred_region
          %v1308 = vld [vmem:[#allocation3] sm:$0xff]
          %v1309 = vld [vmem:[#allocation3 + $0x8] sm:$0xff]
          %v1310 = vrcp.pop %v1308
          %v1311 = vrcp.pop %v1309
          %1313 = vset.pattern.permute.xlu0 0
          %1314 = vperm.xlu0 %1313, %v1310
          %v1315 = vpop.permute.xlu0 %1314
          %1318 = vset.pattern.permute.xlu0 0
          %1319 = vperm.xlu0 %1318, %v1311
          %v1320 = vpop.permute.xlu0 %1319
          %1322 = vset.pattern.permute.xlu0 1
          %1323 = vperm.xlu0 %1322, %v1310
          %v1324 = vpop.permute.xlu0 %1323
          %1326 = vset.pattern.permute.xlu0 1
          %1327 = vperm.xlu0 %1326, %v1311
          %v1328 = vpop.permute.xlu0 %1327
          %1330 = vset.pattern.permute.xlu0 2
          %1331 = vperm.xlu0 %1330, %v1310
          %v1332 = vpop.permute.xlu0 %1331
          %1334 = vset.pattern.permute.xlu0 2
          %1335 = vperm.xlu0 %1334, %v1311
          %v1336 = vpop.permute.xlu0 %1335
          %1338 = vset.pattern.permute.xlu0 3
          %1339 = vperm.xlu0 %1338, %v1310
          %v1340 = vpop.permute.xlu0 %1339
          %1342 = vset.pattern.permute.xlu0 3
          %1343 = vperm.xlu0 %1342, %v1311
          %v1344 = vpop.permute.xlu0 %1343
          %v1346 = vld [vmem:[#allocation4] sm:$0xff]
          %v1347 = vld [vmem:[#allocation4 + $0x8] sm:$0xff]
          %vm1348 = vcmask 64512
          %v1349 = vsel %vm1348, %v1315, %v1324
          %v1350 = vsel %vm1348, %v1320, %v1328
          %vm1351 = vcmask 130048
          %v1352 = vsel %vm1351, %v1349, %v1332
          %v1353 = vsel %vm1351, %v1350, %v1336
          %vm1354 = vcmask 195584
          %v1355 = vsel %vm1354, %v1352, %v1340
          %v1356 = vsel %vm1354, %v1353, %v1344
          %v1357 = vmul.f32 %v1346, %v1355
          %v1358 = vmul.f32 %v1347, %v1356
          %v1359 = vpack.c.bf16 %v1357, %v1357
          %v1360 = vpack.c.bf16 %v1358, %v1358
          %vm1361 = vcmask 257024
          %1362 = vst.msk [vmem:[%s316] sm:$0xf] %vm1361, %v1359
          %1363 = vst.msk [vmem:[%s316 + $0x4] sm:$0xf] %vm1361, %v1360
        $region60: #{tpu_custom_call.1} parent=31 // pred_fallthru
          _
        %s1364 = sand.u32 %s144, 1
        %s1365 = scalar_lea.sflag [#allocation7], %s1364
        %s1366 = sand.u32 %s144, 1
        %s1367 = smul.addr %s1366, 8
        %s1368 = scalar_lea.vmem [#allocation11], %s1367
        // Predicated region
        $region61: #{tpu_custom_call.1} parent=31 // pred_check
          %p1369 = pneg %p154
        $region62: #{tpu_custom_call.1} parent=31 // pred_check_branch
          %1371 = sbr.rel (%p1369) target = $region64
        $region63: #{tpu_custom_call.1} parent=31 // pred_region
          %s1372 = smul.u32 2, %s29
          %1374 = vsyncadd %s1365, 0
          %s1375 = smul.addr %s28, 2
          %s1376 = sadd.s32 %s1372, %s1375
          %s1377 = smul.addr %s1376, 4
          %s1378 = scalar_lea.hbm %s3, %s1377
          %s1379 = sshll.u32 %s1368, 4
          %s1380 = int_to_ptr.vmem [resolvable:$true] %s1379
          %s1381 = sshll.u32 %s1378, 4
          %s1382 = int_to_ptr.hbm [resolvable:$true] %s1381
          %1387 = dma.vmem_to_hbm [thread:$0]  %s1380, 128, %s1382, %s1365, 64, 64, 4
        $region64: #{tpu_custom_call.1} parent=31 // pred_fallthru
          _
      $region32: #{tpu_custom_call.1} parent=5 // pred_fallthru
        _
      %p1388 = scmp.le.s32.totalorder 2, %s18
      // Predicated region
      $region65: #{tpu_custom_call.1} parent=5 // pred_check
        %p1389 = pneg %p1388
      $region66: #{tpu_custom_call.1} parent=5 // pred_check_branch
        %1391 = sbr.rel (%p1389) target = $region68
      $region67: #{tpu_custom_call.1} parent=5 // pred_region
        %s1392 = ssub.s32 %s18, 2
        // Predicated region
        $region69: #{tpu_custom_call.1} parent=67 // pred_check
          %p1393 = pneg %p160
        $region70: #{tpu_custom_call.1} parent=67 // pred_check_branch
          %1395 = sbr.rel (%p1393) target = $region72
        $region71: #{tpu_custom_call.1} parent=67 // pred_region
          %s1396 = sand.u32 %s145, 1
          %s1397 = scalar_lea.sflag [#allocation7], %s1396
          %s1398 = sand.u32 %s145, 1
          %s1399 = smul.addr %s1398, 8
          %s1400 = scalar_lea.vmem [#allocation11], %s1399
          %1402 = dma.done %s1397, 128
        $region72: #{tpu_custom_call.1} parent=67 // pred_fallthru
          _
      $region68: #{tpu_custom_call.1} parent=5 // pred_fallthru
        _
    $region6: #{tpu_custom_call.1} parent=1 // loop_footer
      %s22 = sadd.s32 1, %s18
    $region7: #{tpu_custom_call.1} parent=1 // loop_footer_branch
      %17 = sbr.rel target = $region3
    $region8: #{tpu_custom_call.1} parent=1 // loop_exit
      _
    %1403 = vsyncpa [#allocation6], 1
    %s1404 = scalar_lea.sflag [#allocation6], 1
    %1405 = vsyncpa %s1404, 1
    %1406 = vsyncpa [#allocation9], 1
    %s1407 = scalar_lea.sflag [#allocation9], 1
    %1408 = vsyncpa %s1407, 1
    %1409 = vsyncpa [#allocation7], 1
    %s1410 = scalar_lea.sflag [#allocation7], 1
    %1411 = vsyncpa %s1410, 1

</llo_original>
